<compile_context>
chip_gen: v7x
topology: tpu7x:2x2x1
jax: 0.10.0
libtpu: 0.0.40
codegen_flags: <defaults>
</compile_context>

<pallas_src>
import jax
import jax.numpy as jnp
from jax.experimental import pallas as pl
from jax.experimental.pallas import tpu as pltpu


EMB = 128            # embedding_dimension (module default)
CAT_PROP_SIZE = 11   # cat_prop_size (module default)
CAT_PAD = 128        # cat_prop padded to a lane-dense width
OUT_PAD = 128        # 2-class head padded to lane-dense width
NUM_REL = 2


def _leaky_relu(x, slope=0.01):
    return jnp.where(x > 0, x, slope * x)


# ----------------------------------------------------------------------------
# Pallas kernel: whole forward pass (fits comfortably in VMEM at N=128).
# ----------------------------------------------------------------------------
def botrgcn4_kernel(
    cat_ref,               # (N, CAT_PAD)  bf16   zero-padded cat_prop
    wc_ref, bc_ref,        # (CAT_PAD, E) bf16, (1, E) f32   linear_relu_cat_prop
    wi_ref, bi_ref,        # (E, E) bf16,       (1, E) f32   linear_relu_input
    a_ref,                 # (N, 2N) bf16   [A_rel0 | A_rel1], row-mean-normalized
    wrg_ref, brg_ref,      # (E, 3E) bf16 [root|rel0|rel1], (1, E) f32  RGCNConv
    wo1_ref, bo1_ref,      # (E, E) bf16,       (1, E) f32   linear_relu_output1
    wo2_ref, bo2_ref,      # (E, OUT_PAD) bf16 zero-padded, (1, OUT_PAD) f32
    out_ref,               # (N, OUT_PAD) f32
):
    f32 = jnp.float32
    bf16 = jnp.bfloat16
    e = wi_ref.shape[0]

    # c = LeakyReLU(Linear(cat_prop)); x = LeakyReLU(Linear(c))
    c = _leaky_relu(
        jnp.dot(cat_ref[...], wc_ref[...], preferred_element_type=f32) + bc_ref[...]
    )
    x = _leaky_relu(
        jnp.dot(c.astype(bf16), wi_ref[...], preferred_element_type=f32) + bi_ref[...]
    )

    a = a_ref[...]          # (N, 2N) bf16
    wrg = wrg_ref[...]      # (E, 3E) bf16
    brg = brg_ref[...]      # (1, E)  f32

    def rgcn(h):
        # out = h@W_root + A0@(h@W0) + A1@(h@W1) + b   (aggr='mean', reassociated)
        hw = jnp.dot(h.astype(bf16), wrg, preferred_element_type=f32)      # (N, 3E)
        m = jnp.concatenate([hw[:, e:2 * e], hw[:, 2 * e:3 * e]], axis=0)  # (2N, E)
        agg = jnp.dot(a, m.astype(bf16), preferred_element_type=f32)       # (N, E)
        return hw[:, :e] + agg + brg

    x = rgcn(x)
    # F.dropout in eval mode is identity.
    # TODO(synk): training-mode dropout would need pltpu.prng_seed/prng_random_bits.
    x = rgcn(x)

    x = _leaky_relu(
        jnp.dot(x.astype(bf16), wo1_ref[...], preferred_element_type=f32) + bo1_ref[...]
    )
    out_ref[...] = (
        jnp.dot(x.astype(bf16), wo2_ref[...], preferred_element_type=f32) + bo2_ref[...]
    )


# ----------------------------------------------------------------------------
# Glue: dense per-relation mean-normalized adjacencies, lane-concatenated.
# ----------------------------------------------------------------------------
def build_relation_adjacency(edge_index, edge_type, num_nodes, num_relations=NUM_REL):
    src = edge_index[0]
    dst = edge_index[1]
    adjs = []
    for r in range(num_relations):
        w = (edge_type == r).astype(jnp.float32)
        a = jnp.zeros((num_nodes, num_nodes), jnp.float32).at[dst, src].add(w)
        deg = a.sum(axis=1, keepdims=True)
        a = jnp.where(deg > 0, a / jnp.maximum(deg, 1.0), 0.0)
        adjs.append(a)
    return jnp.concatenate(adjs, axis=1)          # (N, num_relations * N), f32


# ----------------------------------------------------------------------------
# One-time param preparation (cast to bf16, concat RGCN weights, pad head).
# ----------------------------------------------------------------------------
def prepare_params(params):
    f32, bf16 = jnp.float32, jnp.bfloat16
    e = params["w_in"].shape[0]

    wc = jnp.zeros((CAT_PAD, e), f32).at[: params["w_cat"].shape[0], :].set(
        params["w_cat"]).astype(bf16)
    wrg = jnp.concatenate(
        [params["w_root"], params["w_rel0"], params["w_rel1"]], axis=1).astype(bf16)
    wo2 = jnp.zeros((e, OUT_PAD), f32).at[:, : params["w_out2"].shape[1]].set(
        params["w_out2"]).astype(bf16)
    bo2 = jnp.zeros((1, OUT_PAD), f32).at[:, : params["b_out2"].shape[1]].set(
        params["b_out2"])

    return dict(
        wc=wc, bc=params["b_cat"].astype(f32),
        wi=params["w_in"].astype(bf16), bi=params["b_in"].astype(f32),
        wrg=wrg, brg=params["b_rgcn"].astype(f32),
        wo1=params["w_out1"].astype(bf16), bo1=params["b_out1"].astype(f32),
        wo2=wo2, bo2=bo2,
    )


# ----------------------------------------------------------------------------
# Wrapper (matches BotRGCN4.forward signature; des/tweet/num_prop unused).
# ----------------------------------------------------------------------------
def botrgcn4_forward(prepped, des, tweet, num_prop, cat_prop, edge_index, edge_type):
    del des, tweet, num_prop  # unused by BotRGCN4.forward (only cat_prop is used)
    f32, bf16 = jnp.float32, jnp.bfloat16
    n = cat_prop.shape[0]
    e = EMB

    a = build_relation_adjacency(edge_index, edge_type, n).astype(bf16)     # (N, 2N)
    cat_pad = jnp.zeros((n, CAT_PAD), f32).at[:, : cat_prop.shape[1]].set(
        cat_prop).astype(bf16)

    args = (
        cat_pad,
        prepped["wc"], prepped["bc"],
        prepped["wi"], prepped["bi"],
        a,
        prepped["wrg"], prepped["brg"],
        prepped["wo1"], prepped["bo1"],
        prepped["wo2"], prepped["bo2"],
    )

    def full_spec(arr):
        nd = arr.ndim
        return pl.BlockSpec(arr.shape, lambda _nd=nd: (0,) * _nd)

    flops = 2 * n * (
        CAT_PAD * e + e * e                     # input projections
        + 2 * (3 * e * e + 2 * n * e)           # two RGCN hops (wide matmuls)
        + e * e + e * OUT_PAD                   # output head
    )
    bytes_accessed = sum(int(x.size) * x.dtype.itemsize for x in args) + n * OUT_PAD * 4
    cost = pl.CostEstimate(flops=flops, transcendentals=0,
                           bytes_accessed=bytes_accessed)

    out = pl.pallas_call(
        botrgcn4_kernel,
        out_shape=jax.ShapeDtypeStruct((n, OUT_PAD), f32),
        in_specs=[full_spec(x) for x in args],
        out_specs=pl.BlockSpec((n, OUT_PAD), lambda: (0, 0)),
        cost_estimate=cost,
        # Footprint is < 1 MiB at N=128; size the limit to need (portable to v7x).
        compiler_params=pltpu.CompilerParams(vmem_limit_bytes=16 * 1024 * 1024),
    )(*args)
    return out[:, :2]


# ----------------------------------------------------------------------------
# References for correctness checks.
# ----------------------------------------------------------------------------
def botrgcn4_reference_bf16(prepped, cat_prop, edge_index, edge_type):
    """Pure-JAX mirror of the kernel math (same bf16 casts / reassociation)."""
    f32, bf16 = jnp.float32, jnp.bfloat16
    n = cat_prop.shape[0]
    e = EMB
    a = build_relation_adjacency(edge_index, edge_type, n).astype(bf16)
    cat_pad = jnp.zeros((n, CAT_PAD), f32).at[:, : cat_prop.shape[1]].set(
        cat_prop).astype(bf16)
    lrelu = lambda x: jnp.where(x > 0, x, 0.01 * x)
    dot = lambda x, w: jnp.dot(x.astype(bf16), w, preferred_element_type=f32)

    c = lrelu(dot(cat_pad, prepped["wc"]) + prepped["bc"])
    x = lrelu(dot(c, prepped["wi"]) + prepped["bi"])

    def rgcn(h):
        hw = dot(h, prepped["wrg"])
        m = jnp.concatenate([hw[:, e:2 * e], hw[:, 2 * e:3 * e]], axis=0)
        agg = jnp.dot(a, m.astype(bf16), preferred_element_type=f32)
        return hw[:, :e] + agg + prepped["brg"]

    x = rgcn(x)
    x = rgcn(x)
    x = lrelu(dot(x, prepped["wo1"]) + prepped["bo1"])
    return (dot(x, prepped["wo2"]) + prepped["bo2"])[:, :2]


def botrgcn4_reference_f32(params, cat_prop, edge_index, edge_type):
    """Full-f32 reference following the PyTorch module directly."""
    n = cat_prop.shape[0]
    a = build_relation_adjacency(edge_index, edge_type, n)
    a0, a1 = a[:, :n], a[:, n:]
    lrelu = lambda x: jnp.where(x > 0, x, 0.01 * x)
    c = lrelu(cat_prop @ params["w_cat"] + params["b_cat"])
    x = lrelu(c @ params["w_in"] + params["b_in"])

    def rgcn(h):
        return (h @ params["w_root"]
                + (a0 @ h) @ params["w_rel0"]
                + (a1 @ h) @ params["w_rel1"]
                + params["b_rgcn"])

    x = rgcn(x)
    x = rgcn(x)
    x = lrelu(x @ params["w_out1"] + params["b_out1"])
    return x @ params["w_out2"] + params["b_out2"]


def init_params(key, cat_prop_size=CAT_PROP_SIZE, embedding_dimension=EMB):
    e = embedding_dimension
    keys = jax.random.split(key, 8)

    def lin(k, fan_in, fan_out):
        bound = 1.0 / jnp.sqrt(jnp.float32(fan_in))
        kw, kb = jax.random.split(k)
        w = jax.random.uniform(kw, (fan_in, fan_out), jnp.float32, -bound, bound)
        b = jax.random.uniform(kb, (1, fan_out), jnp.float32, -bound, bound)
        return w, b

    w_cat, b_cat = lin(keys[0], cat_prop_size, e)
    w_in, b_in = lin(keys[1], e, e)
    w_out1, b_out1 = lin(keys[2], e, e)
    w_out2, b_out2 = lin(keys[3], e, 2)

    # RGCNConv: glorot-uniform weights, zero bias.
    g = jnp.sqrt(6.0 / (e + e))
    w_root = jax.random.uniform(keys[4], (e, e), jnp.float32, -g, g)
    w_rel0 = jax.random.uniform(keys[5], (e, e), jnp.float32, -g, g)
    w_rel1 = jax.random.uniform(keys[6], (e, e), jnp.float32, -g, g)
    b_rgcn = jnp.zeros((1, e), jnp.float32)

    return dict(
        w_cat=w_cat, b_cat=b_cat,
        w_in=w_in, b_in=b_in,
        w_root=w_root, w_rel0=w_rel0, w_rel1=w_rel1, b_rgcn=b_rgcn,
        w_out1=w_out1, b_out1=b_out1,
        w_out2=w_out2, b_out2=b_out2,
    )


if __name__ == "__main__":
    N = 128
    NUM_EDGES = 512
    DES_SIZE, TWEET_SIZE, NUM_PROP_SIZE = 768, 768, 6

    key = jax.random.PRNGKey(0)
    k_param, k_cat, k_src, k_dst, k_etype, k_des, k_tw, k_np = jax.random.split(key, 8)

    params = init_params(k_param, CAT_PROP_SIZE, EMB)
    prepped = prepare_params(params)   # one-time cast/concat/pad, outside hot path

    cat_prop = jax.random.uniform(k_cat, (N, CAT_PROP_SIZE), jnp.float32)
    des = jax.random.normal(k_des, (N, DES_SIZE), jnp.float32)        # unused by module
    tweet = jax.random.normal(k_tw, (N, TWEET_SIZE), jnp.float32)     # unused by module
    num_prop = jax.random.normal(k_np, (N, NUM_PROP_SIZE), jnp.float32)  # unused
    src = jax.random.randint(k_src, (NUM_EDGES,), 0, N)
    dst = jax.random.randint(k_dst, (NUM_EDGES,), 0, N)
    edge_index = jnp.stack([src, dst], axis=0)                        # (2, E) PyG layout
    edge_type = jax.random.randint(k_etype, (NUM_EDGES,), 0, NUM_REL)

    out = botrgcn4_forward(prepped, des, tweet, num_prop, cat_prop,
                           edge_index, edge_type)
    out = jax.block_until_ready(out)
    assert out.shape == (N, 2)

    ref_bf16 = botrgcn4_reference_bf16(prepped, cat_prop, edge_index, edge_type)
    assert jnp.allclose(out, ref_bf16, atol=2e-2, rtol=2e-2), "Pallas/bf16-ref mismatch"

    ref_f32 = botrgcn4_reference_f32(params, cat_prop, edge_index, edge_type)
    assert jnp.allclose(out, ref_f32, atol=1e-1, rtol=1e-1), "Pallas/f32-ref mismatch"

    print("KERNEL_OK")
</pallas_src>

<mosaic_0001>
module attributes {stable_mosaic.version = 11 : i64} {
  func.func @botrgcn4_kernel(%arg0: memref<128x128xbf16, #tpu.memory_space<vmem>>, %arg1: memref<128x128xbf16, #tpu.memory_space<vmem>>, %arg2: memref<1x128xf32, #tpu.memory_space<vmem>>, %arg3: memref<128x128xbf16, #tpu.memory_space<vmem>>, %arg4: memref<1x128xf32, #tpu.memory_space<vmem>>, %arg5: memref<128x256xbf16, #tpu.memory_space<vmem>>, %arg6: memref<128x384xbf16, #tpu.memory_space<vmem>>, %arg7: memref<1x128xf32, #tpu.memory_space<vmem>>, %arg8: memref<128x128xbf16, #tpu.memory_space<vmem>>, %arg9: memref<1x128xf32, #tpu.memory_space<vmem>>, %arg10: memref<128x128xbf16, #tpu.memory_space<vmem>>, %arg11: memref<1x128xf32, #tpu.memory_space<vmem>>, %arg12: memref<128x128xf32, #tpu.memory_space<vmem>>) attributes {dimension_semantics = [], scalar_prefetch = 0 : i64, scratch_operands = 0 : i64, tpu.core_type = #tpu.core_type<tc>} {
    %c0 = arith.constant 0 : index
    %c0_0 = arith.constant 0 : index
    %0 = vector.load %arg0[%c0, %c0_0] : memref<128x128xbf16, #tpu.memory_space<vmem>>, vector<128x128xbf16>
    %c0_1 = arith.constant 0 : index
    %c0_2 = arith.constant 0 : index
    %1 = vector.load %arg1[%c0_1, %c0_2] : memref<128x128xbf16, #tpu.memory_space<vmem>>, vector<128x128xbf16>
    %cst = arith.constant dense<0.000000e+00> : vector<128x128xf32>
    %2 = tpu.matmul %0, %1, %cst {dimension_numbers = #tpu.dot_dimension_numbers<[1], [0], [0], [1], [0, 0, 1, 1], [], []>} : vector<128x128xbf16>, vector<128x128xbf16>, vector<128x128xf32> -> vector<128x128xf32>
    %c0_3 = arith.constant 0 : index
    %c0_4 = arith.constant 0 : index
    %3 = vector.load %arg2[%c0_3, %c0_4] : memref<1x128xf32, #tpu.memory_space<vmem>>, vector<1x128xf32>
    %4 = vector.broadcast %3 : vector<1x128xf32> to vector<128x128xf32>
    %5 = arith.addf %2, %4 : vector<128x128xf32>
    %cst_5 = arith.constant 0.000000e+00 : f32
    %6 = vector.broadcast %cst_5 : f32 to vector<128x128xf32>
    %7 = arith.cmpf ogt, %5, %6 : vector<128x128xf32>
    %cst_6 = arith.constant 0.00999999977 : f32
    %8 = vector.broadcast %cst_6 : f32 to vector<128x128xf32>
    %9 = arith.mulf %8, %5 : vector<128x128xf32>
    %10 = arith.select %7, %5, %9 : vector<128x128xi1>, vector<128x128xf32>
    %11 = arith.truncf %10 : vector<128x128xf32> to vector<128x128xbf16>
    %c0_7 = arith.constant 0 : index
    %c0_8 = arith.constant 0 : index
    %12 = vector.load %arg3[%c0_7, %c0_8] : memref<128x128xbf16, #tpu.memory_space<vmem>>, vector<128x128xbf16>
    %cst_9 = arith.constant dense<0.000000e+00> : vector<128x128xf32>
    %13 = tpu.matmul %11, %12, %cst_9 {dimension_numbers = #tpu.dot_dimension_numbers<[1], [0], [0], [1], [0, 0, 1, 1], [], []>} : vector<128x128xbf16>, vector<128x128xbf16>, vector<128x128xf32> -> vector<128x128xf32>
    %c0_10 = arith.constant 0 : index
    %c0_11 = arith.constant 0 : index
    %14 = vector.load %arg4[%c0_10, %c0_11] : memref<1x128xf32, #tpu.memory_space<vmem>>, vector<1x128xf32>
    %15 = vector.broadcast %14 : vector<1x128xf32> to vector<128x128xf32>
    %16 = arith.addf %13, %15 : vector<128x128xf32>
    %cst_12 = arith.constant 0.000000e+00 : f32
    %17 = vector.broadcast %cst_12 : f32 to vector<128x128xf32>
    %18 = arith.cmpf ogt, %16, %17 : vector<128x128xf32>
    %cst_13 = arith.constant 0.00999999977 : f32
    %19 = vector.broadcast %cst_13 : f32 to vector<128x128xf32>
    %20 = arith.mulf %19, %16 : vector<128x128xf32>
    %21 = arith.select %18, %16, %20 : vector<128x128xi1>, vector<128x128xf32>
    %c0_14 = arith.constant 0 : index
    %c0_15 = arith.constant 0 : index
    %22 = vector.load %arg5[%c0_14, %c0_15] : memref<128x256xbf16, #tpu.memory_space<vmem>>, vector<128x256xbf16>
    %c0_16 = arith.constant 0 : index
    %c0_17 = arith.constant 0 : index
    %23 = vector.load %arg6[%c0_16, %c0_17] : memref<128x384xbf16, #tpu.memory_space<vmem>>, vector<128x384xbf16>
    %c0_18 = arith.constant 0 : index
    %c0_19 = arith.constant 0 : index
    %24 = vector.load %arg7[%c0_18, %c0_19] : memref<1x128xf32, #tpu.memory_space<vmem>>, vector<1x128xf32>
    %25 = arith.truncf %21 : vector<128x128xf32> to vector<128x128xbf16>
    %cst_20 = arith.constant dense<0.000000e+00> : vector<128x384xf32>
    %26 = tpu.matmul %25, %23, %cst_20 {dimension_numbers = #tpu.dot_dimension_numbers<[1], [0], [0], [1], [0, 0, 1, 1], [], []>} : vector<128x128xbf16>, vector<128x384xbf16>, vector<128x384xf32> -> vector<128x384xf32>
    %27 = vector.extract_strided_slice %26 {offsets = [0, 128], sizes = [128, 128], strides = [1, 1]} : vector<128x384xf32> to vector<128x128xf32>
    %28 = vector.extract_strided_slice %26 {offsets = [0, 256], sizes = [128, 128], strides = [1, 1]} : vector<128x384xf32> to vector<128x128xf32>
    %29 = tpu.concatenate %27, %28 in 0 : vector<128x128xf32>, vector<128x128xf32> -> vector<256x128xf32>
    %30 = arith.truncf %29 : vector<256x128xf32> to vector<256x128xbf16>
    %cst_21 = arith.constant dense<0.000000e+00> : vector<128x128xf32>
    %31 = tpu.matmul %22, %30, %cst_21 {dimension_numbers = #tpu.dot_dimension_numbers<[1], [0], [0], [1], [0, 0, 1, 1], [], []>} : vector<128x256xbf16>, vector<256x128xbf16>, vector<128x128xf32> -> vector<128x128xf32>
    %32 = vector.extract_strided_slice %26 {offsets = [0, 0], sizes = [128, 128], strides = [1, 1]} : vector<128x384xf32> to vector<128x128xf32>
    %33 = arith.addf %32, %31 : vector<128x128xf32>
    %34 = vector.broadcast %24 : vector<1x128xf32> to vector<128x128xf32>
    %35 = arith.addf %33, %34 : vector<128x128xf32>
    %36 = arith.truncf %35 : vector<128x128xf32> to vector<128x128xbf16>
    %cst_22 = arith.constant dense<0.000000e+00> : vector<128x384xf32>
    %37 = tpu.matmul %36, %23, %cst_22 {dimension_numbers = #tpu.dot_dimension_numbers<[1], [0], [0], [1], [0, 0, 1, 1], [], []>} : vector<128x128xbf16>, vector<128x384xbf16>, vector<128x384xf32> -> vector<128x384xf32>
    %38 = vector.extract_strided_slice %37 {offsets = [0, 128], sizes = [128, 128], strides = [1, 1]} : vector<128x384xf32> to vector<128x128xf32>
    %39 = vector.extract_strided_slice %37 {offsets = [0, 256], sizes = [128, 128], strides = [1, 1]} : vector<128x384xf32> to vector<128x128xf32>
    %40 = tpu.concatenate %38, %39 in 0 : vector<128x128xf32>, vector<128x128xf32> -> vector<256x128xf32>
    %41 = arith.truncf %40 : vector<256x128xf32> to vector<256x128xbf16>
    %cst_23 = arith.constant dense<0.000000e+00> : vector<128x128xf32>
    %42 = tpu.matmul %22, %41, %cst_23 {dimension_numbers = #tpu.dot_dimension_numbers<[1], [0], [0], [1], [0, 0, 1, 1], [], []>} : vector<128x256xbf16>, vector<256x128xbf16>, vector<128x128xf32> -> vector<128x128xf32>
    %43 = vector.extract_strided_slice %37 {offsets = [0, 0], sizes = [128, 128], strides = [1, 1]} : vector<128x384xf32> to vector<128x128xf32>
    %44 = arith.addf %43, %42 : vector<128x128xf32>
    %45 = vector.broadcast %24 : vector<1x128xf32> to vector<128x128xf32>
    %46 = arith.addf %44, %45 : vector<128x128xf32>
    %47 = arith.truncf %46 : vector<128x128xf32> to vector<128x128xbf16>
    %c0_24 = arith.constant 0 : index
    %c0_25 = arith.constant 0 : index
    %48 = vector.load %arg8[%c0_24, %c0_25] : memref<128x128xbf16, #tpu.memory_space<vmem>>, vector<128x128xbf16>
    %cst_26 = arith.constant dense<0.000000e+00> : vector<128x128xf32>
    %49 = tpu.matmul %47, %48, %cst_26 {dimension_numbers = #tpu.dot_dimension_numbers<[1], [0], [0], [1], [0, 0, 1, 1], [], []>} : vector<128x128xbf16>, vector<128x128xbf16>, vector<128x128xf32> -> vector<128x128xf32>
    %c0_27 = arith.constant 0 : index
    %c0_28 = arith.constant 0 : index
    %50 = vector.load %arg9[%c0_27, %c0_28] : memref<1x128xf32, #tpu.memory_space<vmem>>, vector<1x128xf32>
    %51 = vector.broadcast %50 : vector<1x128xf32> to vector<128x128xf32>
    %52 = arith.addf %49, %51 : vector<128x128xf32>
    %cst_29 = arith.constant 0.000000e+00 : f32
    %53 = vector.broadcast %cst_29 : f32 to vector<128x128xf32>
    %54 = arith.cmpf ogt, %52, %53 : vector<128x128xf32>
    %cst_30 = arith.constant 0.00999999977 : f32
    %55 = vector.broadcast %cst_30 : f32 to vector<128x128xf32>
    %56 = arith.mulf %55, %52 : vector<128x128xf32>
    %57 = arith.select %54, %52, %56 : vector<128x128xi1>, vector<128x128xf32>
    %58 = arith.truncf %57 : vector<128x128xf32> to vector<128x128xbf16>
    %c0_31 = arith.constant 0 : index
    %c0_32 = arith.constant 0 : index
    %59 = vector.load %arg10[%c0_31, %c0_32] : memref<128x128xbf16, #tpu.memory_space<vmem>>, vector<128x128xbf16>
    %cst_33 = arith.constant dense<0.000000e+00> : vector<128x128xf32>
    %60 = tpu.matmul %58, %59, %cst_33 {dimension_numbers = #tpu.dot_dimension_numbers<[1], [0], [0], [1], [0, 0, 1, 1], [], []>} : vector<128x128xbf16>, vector<128x128xbf16>, vector<128x128xf32> -> vector<128x128xf32>
    %c0_34 = arith.constant 0 : index
    %c0_35 = arith.constant 0 : index
    %61 = vector.load %arg11[%c0_34, %c0_35] : memref<1x128xf32, #tpu.memory_space<vmem>>, vector<1x128xf32>
    %62 = vector.broadcast %61 : vector<1x128xf32> to vector<128x128xf32>
    %63 = arith.addf %60, %62 : vector<128x128xf32>
    %c0_36 = arith.constant 0 : index
    %c0_37 = arith.constant 0 : index
    %64 = vector.load %arg12[%c0_36, %c0_37] : memref<128x128xf32, #tpu.memory_space<vmem>>, vector<128x128xf32>
    tpu.vector_store %arg12[%c0_36, %c0_37], %63 {strides = array<i32>} : memref<128x128xf32, #tpu.memory_space<vmem>>, vector<128x128xf32>,
    return
  }
}

</mosaic_0001>

<llo_original>
// kernel: tpu_custom_call.1
$region0: #{tpu_custom_call.1}
  #allocation0 [shape = 'u32[]', space=smem, size = 0x4, offset = 0x4, fixed_abs, tag = 'smem constant byte address 0x4 - core index']
  #allocation1 [shape = 'u32[144,128]{1,0:T(1,128)}', space=vmem, size = 0x12000, scoped, tag = 'internal scratch']
  %s0 = inlined_call_operand.hbm [shape: bf16[128,128], index: 0, kind: input, shape index: {}]
  %s1 = inlined_call_operand.hbm [shape: bf16[128,128], index: 1, kind: input, shape index: {}]
  %s2 = inlined_call_operand.vmem [shape: f32[1,128], index: 2, kind: input, shape index: {}]
  %s3 = inlined_call_operand.hbm [shape: bf16[128,128], index: 3, kind: input, shape index: {}]
  %s4 = inlined_call_operand.vmem [shape: f32[1,128], index: 4, kind: input, shape index: {}]
  %s5 = inlined_call_operand.hbm [shape: bf16[128,256], index: 5, kind: input, shape index: {}]
  %s6 = inlined_call_operand.hbm [shape: bf16[128,384], index: 6, kind: input, shape index: {}]
  %s7 = inlined_call_operand.vmem [shape: f32[1,128], index: 7, kind: input, shape index: {}]
  %s8 = inlined_call_operand.hbm [shape: bf16[128,128], index: 8, kind: input, shape index: {}]
  %s9 = inlined_call_operand.vmem [shape: f32[1,128], index: 9, kind: input, shape index: {}]
  %s10 = inlined_call_operand.hbm [shape: bf16[128,128], index: 10, kind: input, shape index: {}]
  %s11 = inlined_call_operand.vmem [shape: f32[1,128], index: 11, kind: input, shape index: {}]
  %s12 = inlined_call_operand.hbm [shape: f32[128,128], index: 12, kind: output, shape index: {}]
  %s13 = sld [smem:[#allocation0]]
  $region86: #{tpu_custom_call.1} parent=0
    _
  %s15 = ssub.s32 1, %s13
  %s16 = scalar_select 0, %s15, %s13
  $region1: #{tpu_custom_call.1} parent=0
    #allocation2 [shape = 'u8[32768]{0}', space=vmem, size = 0x8000, scoped, tag = 'input window, operand 0, single buffered']
    #allocation3 [shape = 's32[1]{0}', space=sflag, size = 0x4, scoped, tag = 'scoped memory for tpu_custom_call.1']
    #allocation4 [shape = 's32[1]{0}', space=sflag, size = 0x4, scoped, tag = 'scoped memory for tpu_custom_call.1']
    #allocation5 [shape = 'u8[32768]{0}', space=vmem, size = 0x8000, scoped, tag = 'input window, operand 1, single buffered']
    #allocation6 [shape = 's32[1]{0}', space=sflag, size = 0x4, scoped, tag = 'scoped memory for tpu_custom_call.1']
    #allocation7 [shape = 'u8[32768]{0}', space=vmem, size = 0x8000, scoped, tag = 'input window, operand 3, single buffered']
    #allocation8 [shape = 'u8[65536]{0}', space=vmem, size = 0x10000, scoped, tag = 'input window, operand 5, single buffered']
    #allocation9 [shape = 's32[1]{0}', space=sflag, size = 0x4, scoped, tag = 'scoped memory for tpu_custom_call.1']
    #allocation10 [shape = 'u8[98304]{0}', space=vmem, size = 0x18000, scoped, tag = 'input window, operand 6, single buffered']
    #allocation11 [shape = 'u8[32768]{0}', space=vmem, size = 0x8000, scoped, tag = 'input window, operand 8, single buffered']
    #allocation12 [shape = 's32[1]{0}', space=sflag, size = 0x4, scoped, tag = 'scoped memory for tpu_custom_call.1']
    #allocation13 [shape = 'u8[32768]{0}', space=vmem, size = 0x8000, scoped, tag = 'input window, operand 10, single buffered']
    #allocation14 [shape = 'u8[65536]{0}', space=vmem, size = 0x10000, scoped, tag = 'output window, operand 0, single buffered']
    %17 = vsyncpa [#allocation3], 0
    %18 = vsyncpa [#allocation6], 0
    %19 = vsyncpa [#allocation9], 0
    %20 = vsyncpa [#allocation12], 0
    %21 = vsyncpa [#allocation4], 0
    // Predicated region
    $region2: #{tpu_custom_call.1} parent=1 // pred_check
      _
    $region3: #{tpu_custom_call.1} parent=1 // pred_check_branch
      %23 = sbr.rel (0) target = $region5
    $region4: #{tpu_custom_call.1} parent=1 // pred_region
      %s25 = ssub.s32 1024, 1024
      %26 = vsyncadd [#allocation3], %s25
      %s27 = sshll.u32 [#allocation2], 4
      %s28 = int_to_ptr.vmem [resolvable:$true] %s27
      %33 = dma.hbm_to_vmem [thread:$0]  %s0, 1024, %s28, [#allocation3], 64, 64, 4
    $region5: #{tpu_custom_call.1} parent=1 // pred_fallthru
      _
    // Predicated region
    $region6: #{tpu_custom_call.1} parent=1 // pred_check
      _
    $region7: #{tpu_custom_call.1} parent=1 // pred_check_branch
      %35 = sbr.rel (0) target = $region9
    $region8: #{tpu_custom_call.1} parent=1 // pred_region
      %s37 = ssub.s32 1024, 1024
      %38 = vsyncadd [#allocation6], %s37
      %s39 = sshll.u32 [#allocation5], 4
      %s40 = int_to_ptr.vmem [resolvable:$true] %s39
      %45 = dma.hbm_to_vmem [thread:$0]  %s1, 1024, %s40, [#allocation6], 64, 64, 4
    $region9: #{tpu_custom_call.1} parent=1 // pred_fallthru
      _
    // Predicated region
    $region10: #{tpu_custom_call.1} parent=1 // pred_check
      _
    $region11: #{tpu_custom_call.1} parent=1 // pred_check_branch
      %47 = sbr.rel (0) target = $region13
    $region12: #{tpu_custom_call.1} parent=1 // pred_region
      _
    $region13: #{tpu_custom_call.1} parent=1 // pred_fallthru
      _
    // Predicated region
    $region14: #{tpu_custom_call.1} parent=1 // pred_check
      _
    $region15: #{tpu_custom_call.1} parent=1 // pred_check_branch
      %49 = sbr.rel (0) target = $region17
    $region16: #{tpu_custom_call.1} parent=1 // pred_region
      %s51 = ssub.s32 1024, 1024
      %52 = vsyncadd [#allocation6], %s51
      %s53 = sshll.u32 [#allocation7], 4
      %s54 = int_to_ptr.vmem [resolvable:$true] %s53
      %59 = dma.hbm_to_vmem [thread:$0]  %s3, 1024, %s54, [#allocation6], 64, 64, 4
    $region17: #{tpu_custom_call.1} parent=1 // pred_fallthru
      _
    // Predicated region
    $region18: #{tpu_custom_call.1} parent=1 // pred_check
      _
    $region19: #{tpu_custom_call.1} parent=1 // pred_check_branch
      %61 = sbr.rel (0) target = $region21
    $region20: #{tpu_custom_call.1} parent=1 // pred_region
      _
    $region21: #{tpu_custom_call.1} parent=1 // pred_fallthru
      _
    // Predicated region
    $region22: #{tpu_custom_call.1} parent=1 // pred_check
      _
    $region23: #{tpu_custom_call.1} parent=1 // pred_check_branch
      %63 = sbr.rel (0) target = $region25
    $region24: #{tpu_custom_call.1} parent=1 // pred_region
      %s65 = ssub.s32 2048, 2048
      %66 = vsyncadd [#allocation9], %s65
      %s67 = sshll.u32 [#allocation8], 4
      %s68 = int_to_ptr.vmem [resolvable:$true] %s67
      %73 = dma.hbm_to_vmem [thread:$0]  %s5, 2048, %s68, [#allocation9], 128, 128, 8
    $region25: #{tpu_custom_call.1} parent=1 // pred_fallthru
      _
    // Predicated region
    $region26: #{tpu_custom_call.1} parent=1 // pred_check
      _
    $region27: #{tpu_custom_call.1} parent=1 // pred_check_branch
      %75 = sbr.rel (0) target = $region29
    $region28: #{tpu_custom_call.1} parent=1 // pred_region
      %s77 = ssub.s32 3072, 3072
      %78 = vsyncadd [#allocation9], %s77
      %s79 = sshll.u32 [#allocation10], 4
      %s80 = int_to_ptr.vmem [resolvable:$true] %s79
      %85 = dma.hbm_to_vmem [thread:$0]  %s6, 3072, %s80, [#allocation9], 192, 192, 12
    $region29: #{tpu_custom_call.1} parent=1 // pred_fallthru
      _
    // Predicated region
    $region30: #{tpu_custom_call.1} parent=1 // pred_check
      _
    $region31: #{tpu_custom_call.1} parent=1 // pred_check_branch
      %87 = sbr.rel (0) target = $region33
    $region32: #{tpu_custom_call.1} parent=1 // pred_region
      _
    $region33: #{tpu_custom_call.1} parent=1 // pred_fallthru
      _
    // Predicated region
    $region34: #{tpu_custom_call.1} parent=1 // pred_check
      _
    $region35: #{tpu_custom_call.1} parent=1 // pred_check_branch
      %89 = sbr.rel (0) target = $region37
    $region36: #{tpu_custom_call.1} parent=1 // pred_region
      %s91 = ssub.s32 1024, 1024
      %92 = vsyncadd [#allocation12], %s91
      %s93 = sshll.u32 [#allocation11], 4
      %s94 = int_to_ptr.vmem [resolvable:$true] %s93
      %99 = dma.hbm_to_vmem [thread:$0]  %s8, 1024, %s94, [#allocation12], 64, 64, 4
    $region37: #{tpu_custom_call.1} parent=1 // pred_fallthru
      _
    // Predicated region
    $region38: #{tpu_custom_call.1} parent=1 // pred_check
      _
    $region39: #{tpu_custom_call.1} parent=1 // pred_check_branch
      %101 = sbr.rel (0) target = $region41
    $region40: #{tpu_custom_call.1} parent=1 // pred_region
      _
    $region41: #{tpu_custom_call.1} parent=1 // pred_fallthru
      _
    // Predicated region
    $region42: #{tpu_custom_call.1} parent=1 // pred_check
      _
    $region43: #{tpu_custom_call.1} parent=1 // pred_check_branch
      %103 = sbr.rel (0) target = $region45
    $region44: #{tpu_custom_call.1} parent=1 // pred_region
      %s105 = ssub.s32 1024, 1024
      %106 = vsyncadd [#allocation12], %s105
      %s107 = sshll.u32 [#allocation13], 4
      %s108 = int_to_ptr.vmem [resolvable:$true] %s107
      %113 = dma.hbm_to_vmem [thread:$0]  %s10, 1024, %s108, [#allocation12], 64, 64, 4
    $region45: #{tpu_custom_call.1} parent=1 // pred_fallthru
      _
    // Predicated region
    $region46: #{tpu_custom_call.1} parent=1 // pred_check
      _
    $region47: #{tpu_custom_call.1} parent=1 // pred_check_branch
      %115 = sbr.rel (0) target = $region49
    $region48: #{tpu_custom_call.1} parent=1 // pred_region
      _
    $region49: #{tpu_custom_call.1} parent=1 // pred_fallthru
      _
    // Predicated region
    $region50: #{tpu_custom_call.1} parent=1 // pred_check
      _
    $region51: #{tpu_custom_call.1} parent=1 // pred_check_branch
      %117 = sbr.rel (0) target = $region53
    $region52: #{tpu_custom_call.1} parent=1 // pred_region
      %118 = dma.done [#allocation3], 1024
    $region53: #{tpu_custom_call.1} parent=1 // pred_fallthru
      _
    // Predicated region
    $region54: #{tpu_custom_call.1} parent=1 // pred_check
      _
    $region55: #{tpu_custom_call.1} parent=1 // pred_check_branch
      %120 = sbr.rel (0) target = $region57
    $region56: #{tpu_custom_call.1} parent=1 // pred_region
      %121 = dma.done [#allocation6], 1024
    $region57: #{tpu_custom_call.1} parent=1 // pred_fallthru
      _
    // Predicated region
    $region58: #{tpu_custom_call.1} parent=1 // pred_check
      _
    $region59: #{tpu_custom_call.1} parent=1 // pred_check_branch
      %123 = sbr.rel (0) target = $region61
    $region60: #{tpu_custom_call.1} parent=1 // pred_region
      %124 = dma.done [#allocation6], 1024
    $region61: #{tpu_custom_call.1} parent=1 // pred_fallthru
      _
    // Predicated region
    $region62: #{tpu_custom_call.1} parent=1 // pred_check
      _
    $region63: #{tpu_custom_call.1} parent=1 // pred_check_branch
      %126 = sbr.rel (0) target = $region65
    $region64: #{tpu_custom_call.1} parent=1 // pred_region
      %127 = dma.done [#allocation9], 2048
    $region65: #{tpu_custom_call.1} parent=1 // pred_fallthru
      _
    // Predicated region
    $region66: #{tpu_custom_call.1} parent=1 // pred_check
      _
    $region67: #{tpu_custom_call.1} parent=1 // pred_check_branch
      %129 = sbr.rel (0) target = $region69
    $region68: #{tpu_custom_call.1} parent=1 // pred_region
      %130 = dma.done [#allocation9], 3072
    $region69: #{tpu_custom_call.1} parent=1 // pred_fallthru
      _
    // Predicated region
    $region70: #{tpu_custom_call.1} parent=1 // pred_check
      _
    $region71: #{tpu_custom_call.1} parent=1 // pred_check_branch
      %132 = sbr.rel (0) target = $region73
    $region72: #{tpu_custom_call.1} parent=1 // pred_region
      %133 = dma.done [#allocation12], 1024
    $region73: #{tpu_custom_call.1} parent=1 // pred_fallthru
      _
    // Predicated region
    $region74: #{tpu_custom_call.1} parent=1 // pred_check
      _
    $region75: #{tpu_custom_call.1} parent=1 // pred_check_branch
      %135 = sbr.rel (0) target = $region77
    $region76: #{tpu_custom_call.1} parent=1 // pred_region
      %136 = dma.done [#allocation12], 1024
    $region77: #{tpu_custom_call.1} parent=1 // pred_fallthru
      _
    %v138 = vld [vmem:[#allocation2] sm:$0xf]
    %v139 = vld [vmem:[#allocation2 + $0x4] sm:$0xf]
    %v140 = vld [vmem:[#allocation2 + $0x8] sm:$0xf]
    %v141 = vld [vmem:[#allocation2 + $0xc] sm:$0xf]
    %v142 = vld [vmem:[#allocation2 + $0x10] sm:$0xf]
    %v143 = vld [vmem:[#allocation2 + $0x14] sm:$0xf]
    %v144 = vld [vmem:[#allocation2 + $0x18] sm:$0xf]
    %v145 = vld [vmem:[#allocation2 + $0x1c] sm:$0xf]
    %v146 = vld [vmem:[#allocation2 + $0x20] sm:$0xf]
    %v147 = vld [vmem:[#allocation2 + $0x24] sm:$0xf]
    %v148 = vld [vmem:[#allocation2 + $0x28] sm:$0xf]
    %v149 = vld [vmem:[#allocation2 + $0x2c] sm:$0xf]
    %v150 = vld [vmem:[#allocation2 + $0x30] sm:$0xf]
    %v151 = vld [vmem:[#allocation2 + $0x34] sm:$0xf]
    %v152 = vld [vmem:[#allocation2 + $0x38] sm:$0xf]
    %v153 = vld [vmem:[#allocation2 + $0x3c] sm:$0xf]
    %v154 = vld [vmem:[#allocation5] sm:$0xf]
    %v155 = vld [vmem:[#allocation5 + $0x4] sm:$0xf]
    %v156 = vld [vmem:[#allocation5 + $0x8] sm:$0xf]
    %v157 = vld [vmem:[#allocation5 + $0xc] sm:$0xf]
    %v158 = vld [vmem:[#allocation5 + $0x10] sm:$0xf]
    %v159 = vld [vmem:[#allocation5 + $0x14] sm:$0xf]
    %v160 = vld [vmem:[#allocation5 + $0x18] sm:$0xf]
    %v161 = vld [vmem:[#allocation5 + $0x1c] sm:$0xf]
    %v162 = vld [vmem:[#allocation5 + $0x20] sm:$0xf]
    %v163 = vld [vmem:[#allocation5 + $0x24] sm:$0xf]
    %v164 = vld [vmem:[#allocation5 + $0x28] sm:$0xf]
    %v165 = vld [vmem:[#allocation5 + $0x2c] sm:$0xf]
    %v166 = vld [vmem:[#allocation5 + $0x30] sm:$0xf]
    %v167 = vld [vmem:[#allocation5 + $0x34] sm:$0xf]
    %v168 = vld [vmem:[#allocation5 + $0x38] sm:$0xf]
    %v169 = vld [vmem:[#allocation5 + $0x3c] sm:$0xf]
    %v170 = vld [vmem:[%s2] sm:$0x1]
    %v172 = vlaneseq
    %v173 = vshrl.u32 %v172, 7
    %v174 = vsub.s32 0, %v173
    %v175 = vrot.slane %v170, %v174
    %v193 = vunpack.c.l.b16 %v138
    %v194 = vunpack.c.l.b16 %v139
    %v195 = vunpack.c.l.b16 %v140
    %v196 = vunpack.c.l.b16 %v141
    %v197 = vunpack.c.l.b16 %v142
    %v198 = vunpack.c.l.b16 %v143
    %v199 = vunpack.c.l.b16 %v144
    %v200 = vunpack.c.l.b16 %v145
    %v201 = vunpack.c.l.b16 %v146
    %v202 = vunpack.c.l.b16 %v147
    %v203 = vunpack.c.l.b16 %v148
    %v204 = vunpack.c.l.b16 %v149
    %v205 = vunpack.c.l.b16 %v150
    %v206 = vunpack.c.l.b16 %v151
    %v207 = vunpack.c.l.b16 %v152
    %v208 = vunpack.c.l.b16 %v153
    %v209 = vpack.c.b16 %v194, %v193
    %v210 = vpack.c.b16 %v196, %v195
    %v211 = vpack.c.b16 %v198, %v197
    %v212 = vpack.c.b16 %v200, %v199
    %v213 = vpack.c.b16 %v202, %v201
    %v214 = vpack.c.b16 %v204, %v203
    %v215 = vpack.c.b16 %v206, %v205
    %v216 = vpack.c.b16 %v208, %v207
    %v241 = vunpack.c.l.b16 %v154
    %v242 = vunpack.c.l.b16 %v155
    %v243 = vunpack.c.l.b16 %v156
    %v244 = vunpack.c.l.b16 %v157
    %v245 = vunpack.c.l.b16 %v158
    %v246 = vunpack.c.l.b16 %v159
    %v247 = vunpack.c.l.b16 %v160
    %v248 = vunpack.c.l.b16 %v161
    %v249 = vunpack.c.l.b16 %v162
    %v250 = vunpack.c.l.b16 %v163
    %v251 = vunpack.c.l.b16 %v164
    %v252 = vunpack.c.l.b16 %v165
    %v253 = vunpack.c.l.b16 %v166
    %v254 = vunpack.c.l.b16 %v167
    %v255 = vunpack.c.l.b16 %v168
    %v256 = vunpack.c.l.b16 %v169
    %v257 = vpack.c.b16 %v242, %v241
    %v258 = vpack.c.b16 %v244, %v243
    %v259 = vpack.c.b16 %v246, %v245
    %v260 = vpack.c.b16 %v248, %v247
    %v261 = vpack.c.b16 %v250, %v249
    %v262 = vpack.c.b16 %v252, %v251
    %v263 = vpack.c.b16 %v254, %v253
    %v264 = vpack.c.b16 %v256, %v255
    %273 = vmatprep.subr.bf16.mxu0 0
    %274 = vmatpush1.bf16.msra.mxu0 %v257
    %275 = vmatprep.subr.bf16.mxu0 0
    %276 = vmatpush1.bf16.msra.mxu0 %v258
    %277 = vmatprep.subr.bf16.mxu0 0
    %278 = vmatpush1.bf16.msra.mxu0 %v259
    %279 = vmatprep.subr.bf16.mxu0 0
    %280 = vmatpush1.bf16.msra.mxu0 %v260
    %281 = vmatprep.subr.bf16.mxu0 0
    %282 = vmatpush1.bf16.msra.mxu0 %v261
    %283 = vmatprep.subr.bf16.mxu0 0
    %284 = vmatpush1.bf16.msra.mxu0 %v262
    %285 = vmatprep.subr.bf16.mxu0 0
    %286 = vmatpush1.bf16.msra.mxu0 %v263
    %287 = vmatprep.subr.bf16.mxu0 0
    %288 = vmatpush1.bf16.msra.mxu0 %v264
    %289 = vmatprep.subr.bf16.mxu0 0
    %290 = vmatpush1.bf16.msra.mxu0 0
    %291 = vmatprep.subr.bf16.mxu0 0
    %292 = vmatpush1.bf16.msra.mxu0 0
    %293 = vmatprep.subr.bf16.mxu0 0
    %294 = vmatpush1.bf16.msra.mxu0 0
    %295 = vmatprep.subr.bf16.mxu0 0
    %296 = vmatpush1.bf16.msra.mxu0 0
    %297 = vmatprep.subr.bf16.mxu0 0
    %298 = vmatpush1.bf16.msra.mxu0 0
    %299 = vmatprep.subr.bf16.mxu0 0
    %300 = vmatpush1.bf16.msra.mxu0 0
    %301 = vmatprep.subr.bf16.mxu0 0
    %302 = vmatpush1.bf16.msra.mxu0 0
    %303 = vmatprep.subr.bf16.mxu0 0
    %304 = vmatpush1.bf16.msra.mxu0 0
    %305 = vmatprep.mubr.bf16.mxu0 0
    %306 = vmatmul.mubr.bf16.gmra.mrb[0].mxu0 %v209
    %v307 = vpop.f32.mrb[0].mxu0
    %v308 = vadd.f32 %v175, %v307
    %v309 = vpop.f32.mrb[0].mxu0
    %v310 = vpop.f32.mrb[0].mxu0
    %v311 = vadd.f32 %v175, %v310
    %v312 = vpop.f32.mrb[0].mxu0
    %313 = vmatprep.mubr.bf16.mxu0 0
    %314 = vmatmul.mubr.bf16.gmra.mrb[0].mxu0 %v210
    %v315 = vpop.f32.mrb[0].mxu0
    %v316 = vadd.f32 %v175, %v315
    %v317 = vpop.f32.mrb[0].mxu0
    %v318 = vpop.f32.mrb[0].mxu0
    %v319 = vadd.f32 %v175, %v318
    %v320 = vpop.f32.mrb[0].mxu0
    %321 = vmatprep.mubr.bf16.mxu0 0
    %322 = vmatmul.mubr.bf16.gmra.mrb[0].mxu0 %v211
    %v323 = vpop.f32.mrb[0].mxu0
    %v324 = vadd.f32 %v175, %v323
    %v325 = vpop.f32.mrb[0].mxu0
    %v326 = vpop.f32.mrb[0].mxu0
    %v327 = vadd.f32 %v175, %v326
    %v328 = vpop.f32.mrb[0].mxu0
    %329 = vmatprep.mubr.bf16.mxu0 0
    %330 = vmatmul.mubr.bf16.gmra.mrb[0].mxu0 %v212
    %v331 = vpop.f32.mrb[0].mxu0
    %v332 = vadd.f32 %v175, %v331
    %v333 = vpop.f32.mrb[0].mxu0
    %v334 = vpop.f32.mrb[0].mxu0
    %v335 = vadd.f32 %v175, %v334
    %v336 = vpop.f32.mrb[0].mxu0
    %337 = vmatprep.mubr.bf16.mxu0 0
    %338 = vmatmul.mubr.bf16.gmra.mrb[0].mxu0 %v213
    %v339 = vpop.f32.mrb[0].mxu0
    %v340 = vadd.f32 %v175, %v339
    %v341 = vpop.f32.mrb[0].mxu0
    %v342 = vpop.f32.mrb[0].mxu0
    %v343 = vadd.f32 %v175, %v342
    %v344 = vpop.f32.mrb[0].mxu0
    %345 = vmatprep.mubr.bf16.mxu0 0
    %346 = vmatmul.mubr.bf16.gmra.mrb[0].mxu0 %v214
    %v347 = vpop.f32.mrb[0].mxu0
    %v348 = vadd.f32 %v175, %v347
    %v349 = vpop.f32.mrb[0].mxu0
    %v350 = vpop.f32.mrb[0].mxu0
    %v351 = vadd.f32 %v175, %v350
    %v352 = vpop.f32.mrb[0].mxu0
    %353 = vmatprep.mubr.bf16.mxu0 0
    %354 = vmatmul.mubr.bf16.gmra.mrb[0].mxu0 %v215
    %v355 = vpop.f32.mrb[0].mxu0
    %v356 = vadd.f32 %v175, %v355
    %v357 = vpop.f32.mrb[0].mxu0
    %v358 = vpop.f32.mrb[0].mxu0
    %v359 = vadd.f32 %v175, %v358
    %v360 = vpop.f32.mrb[0].mxu0
    %361 = vmatprep.mubr.bf16.mxu0 0
    %362 = vmatmul.mubr.bf16.gmra.mrb[0].mxu0 %v216
    %v363 = vpop.f32.mrb[0].mxu0
    %v364 = vadd.f32 %v175, %v363
    %v365 = vpop.f32.mrb[0].mxu0
    %v366 = vpop.f32.mrb[0].mxu0
    %v367 = vadd.f32 %v175, %v366
    %v368 = vpop.f32.mrb[0].mxu0
    %369 = vdwg.mxu0
    %vm370 = vcmp.gt.f32.partialorder %v308, 0.0
    %vm371 = vcmp.gt.f32.partialorder %v311, 0.0
    %vm372 = vcmp.gt.f32.partialorder %v316, 0.0
    %vm373 = vcmp.gt.f32.partialorder %v319, 0.0
    %vm374 = vcmp.gt.f32.partialorder %v324, 0.0
    %vm375 = vcmp.gt.f32.partialorder %v327, 0.0
    %vm376 = vcmp.gt.f32.partialorder %v332, 0.0
    %vm377 = vcmp.gt.f32.partialorder %v335, 0.0
    %vm378 = vcmp.gt.f32.partialorder %v340, 0.0
    %vm379 = vcmp.gt.f32.partialorder %v343, 0.0
    %vm380 = vcmp.gt.f32.partialorder %v348, 0.0
    %vm381 = vcmp.gt.f32.partialorder %v351, 0.0
    %vm382 = vcmp.gt.f32.partialorder %v356, 0.0
    %vm383 = vcmp.gt.f32.partialorder %v359, 0.0
    %vm384 = vcmp.gt.f32.partialorder %v364, 0.0
    %vm385 = vcmp.gt.f32.partialorder %v367, 0.0
    %v386 = vmul.f32 %v308, 0.01
    %v387 = vmul.f32 %v311, 0.01
    %v388 = vmul.f32 %v316, 0.01
    %v389 = vmul.f32 %v319, 0.01
    %v390 = vmul.f32 %v324, 0.01
    %v391 = vmul.f32 %v327, 0.01
    %v392 = vmul.f32 %v332, 0.01
    %v393 = vmul.f32 %v335, 0.01
    %v394 = vmul.f32 %v340, 0.01
    %v395 = vmul.f32 %v343, 0.01
    %v396 = vmul.f32 %v348, 0.01
    %v397 = vmul.f32 %v351, 0.01
    %v398 = vmul.f32 %v356, 0.01
    %v399 = vmul.f32 %v359, 0.01
    %v400 = vmul.f32 %v364, 0.01
    %v401 = vmul.f32 %v367, 0.01
    %v402 = vsel %vm370, %v308, %v386
    %v403 = vsel %vm371, %v311, %v387
    %v404 = vsel %vm372, %v316, %v388
    %v405 = vsel %vm373, %v319, %v389
    %v406 = vsel %vm374, %v324, %v390
    %v407 = vsel %vm375, %v327, %v391
    %v408 = vsel %vm376, %v332, %v392
    %v409 = vsel %vm377, %v335, %v393
    %v410 = vsel %vm378, %v340, %v394
    %v411 = vsel %vm379, %v343, %v395
    %v412 = vsel %vm380, %v348, %v396
    %v413 = vsel %vm381, %v351, %v397
    %v414 = vsel %vm382, %v356, %v398
    %v415 = vsel %vm383, %v359, %v399
    %v416 = vsel %vm384, %v364, %v400
    %v417 = vsel %vm385, %v367, %v401
    %v418 = vpack.c.bf16 %v403, %v402
    %v419 = vpack.c.bf16 %v405, %v404
    %v420 = vpack.c.bf16 %v407, %v406
    %v421 = vpack.c.bf16 %v409, %v408
    %v422 = vpack.c.bf16 %v411, %v410
    %v423 = vpack.c.bf16 %v413, %v412
    %v424 = vpack.c.bf16 %v415, %v414
    %v425 = vpack.c.bf16 %v417, %v416
    %v426 = vld [vmem:[#allocation7] sm:$0xf]
    %v427 = vld [vmem:[#allocation7 + $0x4] sm:$0xf]
    %v428 = vld [vmem:[#allocation7 + $0x8] sm:$0xf]
    %v429 = vld [vmem:[#allocation7 + $0xc] sm:$0xf]
    %v430 = vld [vmem:[#allocation7 + $0x10] sm:$0xf]
    %v431 = vld [vmem:[#allocation7 + $0x14] sm:$0xf]
    %v432 = vld [vmem:[#allocation7 + $0x18] sm:$0xf]
    %v433 = vld [vmem:[#allocation7 + $0x1c] sm:$0xf]
    %v434 = vld [vmem:[#allocation7 + $0x20] sm:$0xf]
    %v435 = vld [vmem:[#allocation7 + $0x24] sm:$0xf]
    %v436 = vld [vmem:[#allocation7 + $0x28] sm:$0xf]
    %v437 = vld [vmem:[#allocation7 + $0x2c] sm:$0xf]
    %v438 = vld [vmem:[#allocation7 + $0x30] sm:$0xf]
    %v439 = vld [vmem:[#allocation7 + $0x34] sm:$0xf]
    %v440 = vld [vmem:[#allocation7 + $0x38] sm:$0xf]
    %v441 = vld [vmem:[#allocation7 + $0x3c] sm:$0xf]
    %v442 = vld [vmem:[%s4] sm:$0x1]
    %v444 = vlaneseq
    %v445 = vshrl.u32 %v444, 7
    %v446 = vsub.s32 0, %v445
    %v447 = vrot.slane %v442, %v446
    %v465 = vunpack.c.l.b16 %v426
    %v466 = vunpack.c.l.b16 %v427
    %v467 = vunpack.c.l.b16 %v428
    %v468 = vunpack.c.l.b16 %v429
    %v469 = vunpack.c.l.b16 %v430
    %v470 = vunpack.c.l.b16 %v431
    %v471 = vunpack.c.l.b16 %v432
    %v472 = vunpack.c.l.b16 %v433
    %v473 = vunpack.c.l.b16 %v434
    %v474 = vunpack.c.l.b16 %v435
    %v475 = vunpack.c.l.b16 %v436
    %v476 = vunpack.c.l.b16 %v437
    %v477 = vunpack.c.l.b16 %v438
    %v478 = vunpack.c.l.b16 %v439
    %v479 = vunpack.c.l.b16 %v440
    %v480 = vunpack.c.l.b16 %v441
    %v481 = vpack.c.b16 %v466, %v465
    %v482 = vpack.c.b16 %v468, %v467
    %v483 = vpack.c.b16 %v470, %v469
    %v484 = vpack.c.b16 %v472, %v471
    %v485 = vpack.c.b16 %v474, %v473
    %v486 = vpack.c.b16 %v476, %v475
    %v487 = vpack.c.b16 %v478, %v477
    %v488 = vpack.c.b16 %v480, %v479
    %497 = vmatprep.subr.bf16.mxu0 0
    %498 = vmatpush1.bf16.msra.mxu0 %v481
    %499 = vmatprep.subr.bf16.mxu0 0
    %500 = vmatpush1.bf16.msra.mxu0 %v482
    %501 = vmatprep.subr.bf16.mxu0 0
    %502 = vmatpush1.bf16.msra.mxu0 %v483
    %503 = vmatprep.subr.bf16.mxu0 0
    %504 = vmatpush1.bf16.msra.mxu0 %v484
    %505 = vmatprep.subr.bf16.mxu0 0
    %506 = vmatpush1.bf16.msra.mxu0 %v485
    %507 = vmatprep.subr.bf16.mxu0 0
    %508 = vmatpush1.bf16.msra.mxu0 %v486
    %509 = vmatprep.subr.bf16.mxu0 0
    %510 = vmatpush1.bf16.msra.mxu0 %v487
    %511 = vmatprep.subr.bf16.mxu0 0
    %512 = vmatpush1.bf16.msra.mxu0 %v488
    %513 = vmatprep.subr.bf16.mxu0 0
    %514 = vmatpush1.bf16.msra.mxu0 0
    %515 = vmatprep.subr.bf16.mxu0 0
    %516 = vmatpush1.bf16.msra.mxu0 0
    %517 = vmatprep.subr.bf16.mxu0 0
    %518 = vmatpush1.bf16.msra.mxu0 0
    %519 = vmatprep.subr.bf16.mxu0 0
    %520 = vmatpush1.bf16.msra.mxu0 0
    %521 = vmatprep.subr.bf16.mxu0 0
    %522 = vmatpush1.bf16.msra.mxu0 0
    %523 = vmatprep.subr.bf16.mxu0 0
    %524 = vmatpush1.bf16.msra.mxu0 0
    %525 = vmatprep.subr.bf16.mxu0 0
    %526 = vmatpush1.bf16.msra.mxu0 0
    %527 = vmatprep.subr.bf16.mxu0 0
    %528 = vmatpush1.bf16.msra.mxu0 0
    %529 = vmatprep.mubr.bf16.mxu0 0
    %530 = vmatmul.mubr.bf16.gmra.mrb[0].mxu0 %v418
    %v531 = vpop.f32.mrb[0].mxu0
    %v532 = vadd.f32 %v447, %v531
    %v533 = vpop.f32.mrb[0].mxu0
    %v534 = vpop.f32.mrb[0].mxu0
    %v535 = vadd.f32 %v447, %v534
    %v536 = vpop.f32.mrb[0].mxu0
    %537 = vmatprep.mubr.bf16.mxu0 0
    %538 = vmatmul.mubr.bf16.gmra.mrb[0].mxu0 %v419
    %v539 = vpop.f32.mrb[0].mxu0
    %v540 = vadd.f32 %v447, %v539
    %v541 = vpop.f32.mrb[0].mxu0
    %v542 = vpop.f32.mrb[0].mxu0
    %v543 = vadd.f32 %v447, %v542
    %v544 = vpop.f32.mrb[0].mxu0
    %545 = vmatprep.mubr.bf16.mxu0 0
    %546 = vmatmul.mubr.bf16.gmra.mrb[0].mxu0 %v420
    %v547 = vpop.f32.mrb[0].mxu0
    %v548 = vadd.f32 %v447, %v547
    %v549 = vpop.f32.mrb[0].mxu0
    %v550 = vpop.f32.mrb[0].mxu0
    %v551 = vadd.f32 %v447, %v550
    %v552 = vpop.f32.mrb[0].mxu0
    %553 = vmatprep.mubr.bf16.mxu0 0
    %554 = vmatmul.mubr.bf16.gmra.mrb[0].mxu0 %v421
    %v555 = vpop.f32.mrb[0].mxu0
    %v556 = vadd.f32 %v447, %v555
    %v557 = vpop.f32.mrb[0].mxu0
    %v558 = vpop.f32.mrb[0].mxu0
    %v559 = vadd.f32 %v447, %v558
    %v560 = vpop.f32.mrb[0].mxu0
    %561 = vmatprep.mubr.bf16.mxu0 0
    %562 = vmatmul.mubr.bf16.gmra.mrb[0].mxu0 %v422
    %v563 = vpop.f32.mrb[0].mxu0
    %v564 = vadd.f32 %v447, %v563
    %v565 = vpop.f32.mrb[0].mxu0
    %v566 = vpop.f32.mrb[0].mxu0
    %v567 = vadd.f32 %v447, %v566
    %v568 = vpop.f32.mrb[0].mxu0
    %569 = vmatprep.mubr.bf16.mxu0 0
    %570 = vmatmul.mubr.bf16.gmra.mrb[0].mxu0 %v423
    %v571 = vpop.f32.mrb[0].mxu0
    %v572 = vadd.f32 %v447, %v571
    %v573 = vpop.f32.mrb[0].mxu0
    %v574 = vpop.f32.mrb[0].mxu0
    %v575 = vadd.f32 %v447, %v574
    %v576 = vpop.f32.mrb[0].mxu0
    %577 = vmatprep.mubr.bf16.mxu0 0
    %578 = vmatmul.mubr.bf16.gmra.mrb[0].mxu0 %v424
    %v579 = vpop.f32.mrb[0].mxu0
    %v580 = vadd.f32 %v447, %v579
    %v581 = vpop.f32.mrb[0].mxu0
    %v582 = vpop.f32.mrb[0].mxu0
    %v583 = vadd.f32 %v447, %v582
    %v584 = vpop.f32.mrb[0].mxu0
    %585 = vmatprep.mubr.bf16.mxu0 0
    %586 = vmatmul.mubr.bf16.gmra.mrb[0].mxu0 %v425
    %v587 = vpop.f32.mrb[0].mxu0
    %v588 = vadd.f32 %v447, %v587
    %v589 = vpop.f32.mrb[0].mxu0
    %v590 = vpop.f32.mrb[0].mxu0
    %v591 = vadd.f32 %v447, %v590
    %v592 = vpop.f32.mrb[0].mxu0
    %593 = vdwg.mxu0
    %vm594 = vcmp.gt.f32.partialorder %v532, 0.0
    %vm595 = vcmp.gt.f32.partialorder %v535, 0.0
    %vm596 = vcmp.gt.f32.partialorder %v540, 0.0
    %vm597 = vcmp.gt.f32.partialorder %v543, 0.0
    %vm598 = vcmp.gt.f32.partialorder %v548, 0.0
    %vm599 = vcmp.gt.f32.partialorder %v551, 0.0
    %vm600 = vcmp.gt.f32.partialorder %v556, 0.0
    %vm601 = vcmp.gt.f32.partialorder %v559, 0.0
    %vm602 = vcmp.gt.f32.partialorder %v564, 0.0
    %vm603 = vcmp.gt.f32.partialorder %v567, 0.0
    %vm604 = vcmp.gt.f32.partialorder %v572, 0.0
    %vm605 = vcmp.gt.f32.partialorder %v575, 0.0
    %vm606 = vcmp.gt.f32.partialorder %v580, 0.0
    %vm607 = vcmp.gt.f32.partialorder %v583, 0.0
    %vm608 = vcmp.gt.f32.partialorder %v588, 0.0
    %vm609 = vcmp.gt.f32.partialorder %v591, 0.0
    %v610 = vmul.f32 %v532, 0.01
    %v611 = vmul.f32 %v535, 0.01
    %v612 = vmul.f32 %v540, 0.01
    %v613 = vmul.f32 %v543, 0.01
    %v614 = vmul.f32 %v548, 0.01
    %v615 = vmul.f32 %v551, 0.01
    %v616 = vmul.f32 %v556, 0.01
    %v617 = vmul.f32 %v559, 0.01
    %v618 = vmul.f32 %v564, 0.01
    %v619 = vmul.f32 %v567, 0.01
    %v620 = vmul.f32 %v572, 0.01
    %v621 = vmul.f32 %v575, 0.01
    %v622 = vmul.f32 %v580, 0.01
    %v623 = vmul.f32 %v583, 0.01
    %v624 = vmul.f32 %v588, 0.01
    %v625 = vmul.f32 %v591, 0.01
    %v626 = vsel %vm594, %v532, %v610
    %v627 = vsel %vm595, %v535, %v611
    %v628 = vsel %vm596, %v540, %v612
    %v629 = vsel %vm597, %v543, %v613
    %v630 = vsel %vm598, %v548, %v614
    %v631 = vsel %vm599, %v551, %v615
    %v632 = vsel %vm600, %v556, %v616
    %v633 = vsel %vm601, %v559, %v617
    %v634 = vsel %vm602, %v564, %v618
    %v635 = vsel %vm603, %v567, %v619
    %v636 = vsel %vm604, %v572, %v620
    %v637 = vsel %vm605, %v575, %v621
    %v638 = vsel %vm606, %v580, %v622
    %v639 = vsel %vm607, %v583, %v623
    %v640 = vsel %vm608, %v588, %v624
    %v641 = vsel %vm609, %v591, %v625
    %v642 = vld [vmem:[#allocation8] sm:$0xff]
    %v643 = vld [vmem:[#allocation8 + $0x8] sm:$0xff]
    %v644 = vld [vmem:[#allocation8 + $0x10] sm:$0xff]
    %v645 = vld [vmem:[#allocation8 + $0x18] sm:$0xff]
    %v646 = vld [vmem:[#allocation8 + $0x20] sm:$0xff]
    %v647 = vld [vmem:[#allocation8 + $0x28] sm:$0xff]
    %v648 = vld [vmem:[#allocation8 + $0x30] sm:$0xff]
    %v649 = vld [vmem:[#allocation8 + $0x38] sm:$0xff]
    %v650 = vld [vmem:[#allocation8 + $0x40] sm:$0xff]
    %v651 = vld [vmem:[#allocation8 + $0x48] sm:$0xff]
    %v652 = vld [vmem:[#allocation8 + $0x50] sm:$0xff]
    %v653 = vld [vmem:[#allocation8 + $0x58] sm:$0xff]
    %v654 = vld [vmem:[#allocation8 + $0x60] sm:$0xff]
    %v655 = vld [vmem:[#allocation8 + $0x68] sm:$0xff]
    %v656 = vld [vmem:[#allocation8 + $0x70] sm:$0xff]
    %v657 = vld [vmem:[#allocation8 + $0x78] sm:$0xff]
    %v658 = vld [vmem:[#allocation10] sm:$0xff]
    %v659 = vld [vmem:[#allocation10 + $0x8] sm:$0xf]
    %v660 = vld [vmem:[#allocation10 + $0xc] sm:$0xff]
    %v661 = vld [vmem:[#allocation10 + $0x14] sm:$0xf]
    %v662 = vld [vmem:[#allocation10 + $0x18] sm:$0xff]
    %v663 = vld [vmem:[#allocation10 + $0x20] sm:$0xf]
    %v664 = vld [vmem:[#allocation10 + $0x24] sm:$0xff]
    %v665 = vld [vmem:[#allocation10 + $0x2c] sm:$0xf]
    %v666 = vld [vmem:[#allocation10 + $0x30] sm:$0xff]
    %v667 = vld [vmem:[#allocation10 + $0x38] sm:$0xf]
    %v668 = vld [vmem:[#allocation10 + $0x3c] sm:$0xff]
    %v669 = vld [vmem:[#allocation10 + $0x44] sm:$0xf]
    %v670 = vld [vmem:[#allocation10 + $0x48] sm:$0xff]
    %v671 = vld [vmem:[#allocation10 + $0x50] sm:$0xf]
    %v672 = vld [vmem:[#allocation10 + $0x54] sm:$0xff]
    %v673 = vld [vmem:[#allocation10 + $0x5c] sm:$0xf]
    %v674 = vld [vmem:[#allocation10 + $0x60] sm:$0xff]
    %v675 = vld [vmem:[#allocation10 + $0x68] sm:$0xf]
    %v676 = vld [vmem:[#allocation10 + $0x6c] sm:$0xff]
    %v677 = vld [vmem:[#allocation10 + $0x74] sm:$0xf]
    %v678 = vld [vmem:[#allocation10 + $0x78] sm:$0xff]
    %v679 = vld [vmem:[#allocation10 + $0x80] sm:$0xf]
    %v680 = vld [vmem:[#allocation10 + $0x84] sm:$0xff]
    %v681 = vld [vmem:[#allocation10 + $0x8c] sm:$0xf]
    %v682 = vld [vmem:[#allocation10 + $0x90] sm:$0xff]
    %v683 = vld [vmem:[#allocation10 + $0x98] sm:$0xf]
    %v684 = vld [vmem:[#allocation10 + $0x9c] sm:$0xff]
    %v685 = vld [vmem:[#allocation10 + $0xa4] sm:$0xf]
    %v686 = vld [vmem:[#allocation10 + $0xa8] sm:$0xff]
    %v687 = vld [vmem:[#allocation10 + $0xb0] sm:$0xf]
    %v688 = vld [vmem:[#allocation10 + $0xb4] sm:$0xff]
    %v689 = vld [vmem:[#allocation10 + $0xbc] sm:$0xf]
    %v690 = vld [vmem:[%s7] sm:$0x1]
    %v691 = vpack.c.bf16 %v627, %v626
    %v692 = vpack.c.bf16 %v629, %v628
    %v693 = vpack.c.bf16 %v631, %v630
    %v694 = vpack.c.bf16 %v633, %v632
    %v695 = vpack.c.bf16 %v635, %v634
    %v696 = vpack.c.bf16 %v637, %v636
    %v697 = vpack.c.bf16 %v639, %v638
    %v698 = vpack.c.bf16 %v641, %v640
    %v731 = vunpack.c.l.b16 %v658
    %v732 = vunpack.c.h.b16 %v658
    %v733 = vunpack.c.l.b16 %v659
    %v734 = vunpack.c.l.b16 %v660
    %v735 = vunpack.c.h.b16 %v660
    %v736 = vunpack.c.l.b16 %v661
    %v737 = vunpack.c.l.b16 %v662
    %v738 = vunpack.c.h.b16 %v662
    %v739 = vunpack.c.l.b16 %v663
    %v740 = vunpack.c.l.b16 %v664
    %v741 = vunpack.c.h.b16 %v664
    %v742 = vunpack.c.l.b16 %v665
    %v743 = vunpack.c.l.b16 %v666
    %v744 = vunpack.c.h.b16 %v666
    %v745 = vunpack.c.l.b16 %v667
    %v746 = vunpack.c.l.b16 %v668
    %v747 = vunpack.c.h.b16 %v668
    %v748 = vunpack.c.l.b16 %v669
    %v749 = vunpack.c.l.b16 %v670
    %v750 = vunpack.c.h.b16 %v670
    %v751 = vunpack.c.l.b16 %v671
    %v752 = vunpack.c.l.b16 %v672
    %v753 = vunpack.c.h.b16 %v672
    %v754 = vunpack.c.l.b16 %v673
    %v755 = vunpack.c.l.b16 %v674
    %v756 = vunpack.c.h.b16 %v674
    %v757 = vunpack.c.l.b16 %v675
    %v758 = vunpack.c.l.b16 %v676
    %v759 = vunpack.c.h.b16 %v676
    %v760 = vunpack.c.l.b16 %v677
    %v761 = vunpack.c.l.b16 %v678
    %v762 = vunpack.c.h.b16 %v678
    %v763 = vunpack.c.l.b16 %v679
    %v764 = vunpack.c.l.b16 %v680
    %v765 = vunpack.c.h.b16 %v680
    %v766 = vunpack.c.l.b16 %v681
    %v767 = vunpack.c.l.b16 %v682
    %v768 = vunpack.c.h.b16 %v682
    %v769 = vunpack.c.l.b16 %v683
    %v770 = vunpack.c.l.b16 %v684
    %v771 = vunpack.c.h.b16 %v684
    %v772 = vunpack.c.l.b16 %v685
    %v773 = vunpack.c.l.b16 %v686
    %v774 = vunpack.c.h.b16 %v686
    %v775 = vunpack.c.l.b16 %v687
    %v776 = vunpack.c.l.b16 %v688
    %v777 = vunpack.c.h.b16 %v688
    %v778 = vunpack.c.l.b16 %v689
    %v779 = vpack.c.b16 %v734, %v731
    %v780 = vpack.c.b16 %v735, %v732
    %v781 = vpack.c.b16 %v736, %v733
    %v782 = vpack.c.b16 %v740, %v737
    %v783 = vpack.c.b16 %v741, %v738
    %v784 = vpack.c.b16 %v742, %v739
    %v785 = vpack.c.b16 %v746, %v743
    %v786 = vpack.c.b16 %v747, %v744
    %v787 = vpack.c.b16 %v748, %v745
    %v788 = vpack.c.b16 %v752, %v749
    %v789 = vpack.c.b16 %v753, %v750
    %v790 = vpack.c.b16 %v754, %v751
    %v791 = vpack.c.b16 %v758, %v755
    %v792 = vpack.c.b16 %v759, %v756
    %v793 = vpack.c.b16 %v760, %v757
    %v794 = vpack.c.b16 %v764, %v761
    %v795 = vpack.c.b16 %v765, %v762
    %v796 = vpack.c.b16 %v766, %v763
    %v797 = vpack.c.b16 %v770, %v767
    %v798 = vpack.c.b16 %v771, %v768
    %v799 = vpack.c.b16 %v772, %v769
    %v800 = vpack.c.b16 %v776, %v773
    %v801 = vpack.c.b16 %v777, %v774
    %v802 = vpack.c.b16 %v778, %v775
    %827 = vmatprep.subr.bf16.mxu0 %v780
    %828 = vmatpush1.bf16.msra.mxu0 %v779
    %829 = vmatprep.subr.bf16.mxu0 %v783
    %830 = vmatpush1.bf16.msra.mxu0 %v782
    %831 = vmatprep.subr.bf16.mxu0 %v786
    %832 = vmatpush1.bf16.msra.mxu0 %v785
    %833 = vmatprep.subr.bf16.mxu0 %v789
    %834 = vmatpush1.bf16.msra.mxu0 %v788
    %835 = vmatprep.subr.bf16.mxu0 %v792
    %836 = vmatpush1.bf16.msra.mxu0 %v791
    %837 = vmatprep.subr.bf16.mxu0 %v795
    %838 = vmatpush1.bf16.msra.mxu0 %v794
    %839 = vmatprep.subr.bf16.mxu0 %v798
    %840 = vmatpush1.bf16.msra.mxu0 %v797
    %841 = vmatprep.subr.bf16.mxu0 %v801
    %842 = vmatpush1.bf16.msra.mxu0 %v800
    %843 = vmatprep.subr.bf16.mxu0 0
    %844 = vmatpush1.bf16.msra.mxu0 0
    %845 = vmatprep.subr.bf16.mxu0 0
    %846 = vmatpush1.bf16.msra.mxu0 0
    %847 = vmatprep.subr.bf16.mxu0 0
    %848 = vmatpush1.bf16.msra.mxu0 0
    %849 = vmatprep.subr.bf16.mxu0 0
    %850 = vmatpush1.bf16.msra.mxu0 0
    %851 = vmatprep.subr.bf16.mxu0 0
    %852 = vmatpush1.bf16.msra.mxu0 0
    %853 = vmatprep.subr.bf16.mxu0 0
    %854 = vmatpush1.bf16.msra.mxu0 0
    %855 = vmatprep.subr.bf16.mxu0 0
    %856 = vmatpush1.bf16.msra.mxu0 0
    %857 = vmatprep.subr.bf16.mxu0 0
    %858 = vmatpush1.bf16.msra.mxu0 0
    %859 = vmatprep.mubr.bf16.mxu0 0
    %860 = vmatmul.mubr.bf16.gmra.mrb[0].mxu0 %v691
    %v861 = vpop.f32.mrb[0].mxu0
    %v862 = vadd.f32 0.0, %v861
    %v863 = vpop.f32.mrb[0].mxu0
    %v864 = vadd.f32 0.0, %v863
    %v865 = vpop.f32.mrb[0].mxu0
    %v866 = vadd.f32 0.0, %v865
    %v867 = vpop.f32.mrb[0].mxu0
    %v868 = vadd.f32 0.0, %v867
    %869 = vmatprep.mubr.bf16.mxu0 0
    %870 = vmatmul.mubr.bf16.gmra.mrb[0].mxu0 %v692
    %v871 = vpop.f32.mrb[0].mxu0
    %v872 = vadd.f32 0.0, %v871
    %v873 = vpop.f32.mrb[0].mxu0
    %v874 = vadd.f32 0.0, %v873
    %v875 = vpop.f32.mrb[0].mxu0
    %v876 = vadd.f32 0.0, %v875
    %v877 = vpop.f32.mrb[0].mxu0
    %v878 = vadd.f32 0.0, %v877
    %879 = vmatprep.mubr.bf16.mxu0 0
    %880 = vmatmul.mubr.bf16.gmra.mrb[0].mxu0 %v693
    %v881 = vpop.f32.mrb[0].mxu0
    %v882 = vadd.f32 0.0, %v881
    %v883 = vpop.f32.mrb[0].mxu0
    %v884 = vadd.f32 0.0, %v883
    %v885 = vpop.f32.mrb[0].mxu0
    %v886 = vadd.f32 0.0, %v885
    %v887 = vpop.f32.mrb[0].mxu0
    %v888 = vadd.f32 0.0, %v887
    %889 = vmatprep.mubr.bf16.mxu0 0
    %890 = vmatmul.mubr.bf16.gmra.mrb[0].mxu0 %v694
    %v891 = vpop.f32.mrb[0].mxu0
    %v892 = vadd.f32 0.0, %v891
    %v893 = vpop.f32.mrb[0].mxu0
    %v894 = vadd.f32 0.0, %v893
    %v895 = vpop.f32.mrb[0].mxu0
    %v896 = vadd.f32 0.0, %v895
    %v897 = vpop.f32.mrb[0].mxu0
    %v898 = vadd.f32 0.0, %v897
    %899 = vmatprep.mubr.bf16.mxu0 0
    %900 = vmatmul.mubr.bf16.gmra.mrb[0].mxu0 %v695
    %v901 = vpop.f32.mrb[0].mxu0
    %v902 = vadd.f32 0.0, %v901
    %v903 = vpop.f32.mrb[0].mxu0
    %v904 = vadd.f32 0.0, %v903
    %v905 = vpop.f32.mrb[0].mxu0
    %v906 = vadd.f32 0.0, %v905
    %v907 = vpop.f32.mrb[0].mxu0
    %v908 = vadd.f32 0.0, %v907
    %909 = vmatprep.mubr.bf16.mxu0 0
    %910 = vmatmul.mubr.bf16.gmra.mrb[0].mxu0 %v696
    %v911 = vpop.f32.mrb[0].mxu0
    %v912 = vadd.f32 0.0, %v911
    %v913 = vpop.f32.mrb[0].mxu0
    %v914 = vadd.f32 0.0, %v913
    %v915 = vpop.f32.mrb[0].mxu0
    %v916 = vadd.f32 0.0, %v915
    %v917 = vpop.f32.mrb[0].mxu0
    %v918 = vadd.f32 0.0, %v917
    %919 = vmatprep.mubr.bf16.mxu0 0
    %920 = vmatmul.mubr.bf16.gmra.mrb[0].mxu0 %v697
    %v921 = vpop.f32.mrb[0].mxu0
    %v922 = vadd.f32 0.0, %v921
    %v923 = vpop.f32.mrb[0].mxu0
    %v924 = vadd.f32 0.0, %v923
    %v925 = vpop.f32.mrb[0].mxu0
    %v926 = vadd.f32 0.0, %v925
    %v927 = vpop.f32.mrb[0].mxu0
    %v928 = vadd.f32 0.0, %v927
    %929 = vmatprep.mubr.bf16.mxu0 0
    %930 = vmatmul.mubr.bf16.gmra.mrb[0].mxu0 %v698
    %v931 = vpop.f32.mrb[0].mxu0
    %v932 = vadd.f32 0.0, %v931
    %v933 = vpop.f32.mrb[0].mxu0
    %v934 = vadd.f32 0.0, %v933
    %v935 = vpop.f32.mrb[0].mxu0
    %v936 = vadd.f32 0.0, %v935
    %v937 = vpop.f32.mrb[0].mxu0
    %v938 = vadd.f32 0.0, %v937
    %939 = vdwg.mxu0
    %940 = vmatprep.subr.bf16.mxu0 0
    %941 = vmatpush1.bf16.msra.mxu0 %v781
    %942 = vmatprep.subr.bf16.mxu0 0
    %943 = vmatpush1.bf16.msra.mxu0 %v784
    %944 = vmatprep.subr.bf16.mxu0 0
    %945 = vmatpush1.bf16.msra.mxu0 %v787
    %946 = vmatprep.subr.bf16.mxu0 0
    %947 = vmatpush1.bf16.msra.mxu0 %v790
    %948 = vmatprep.subr.bf16.mxu0 0
    %949 = vmatpush1.bf16.msra.mxu0 %v793
    %950 = vmatprep.subr.bf16.mxu0 0
    %951 = vmatpush1.bf16.msra.mxu0 %v796
    %952 = vmatprep.subr.bf16.mxu0 0
    %953 = vmatpush1.bf16.msra.mxu0 %v799
    %954 = vmatprep.subr.bf16.mxu0 0
    %955 = vmatpush1.bf16.msra.mxu0 %v802
    %956 = vmatprep.subr.bf16.mxu0 0
    %957 = vmatpush1.bf16.msra.mxu0 0
    %958 = vmatprep.subr.bf16.mxu0 0
    %959 = vmatpush1.bf16.msra.mxu0 0
    %960 = vmatprep.subr.bf16.mxu0 0
    %961 = vmatpush1.bf16.msra.mxu0 0
    %962 = vmatprep.subr.bf16.mxu0 0
    %963 = vmatpush1.bf16.msra.mxu0 0
    %964 = vmatprep.subr.bf16.mxu0 0
    %965 = vmatpush1.bf16.msra.mxu0 0
    %966 = vmatprep.subr.bf16.mxu0 0
    %967 = vmatpush1.bf16.msra.mxu0 0
    %968 = vmatprep.subr.bf16.mxu0 0
    %969 = vmatpush1.bf16.msra.mxu0 0
    %970 = vmatprep.subr.bf16.mxu0 0
    %971 = vmatpush1.bf16.msra.mxu0 0
    %972 = vmatprep.mubr.bf16.mxu0 0
    %973 = vmatmul.mubr.bf16.gmra.mrb[0].mxu0 %v691
    %v974 = vpop.f32.mrb[0].mxu0
    %v975 = vadd.f32 0.0, %v974
    %v976 = vpop.f32.mrb[0].mxu0
    %v977 = vpop.f32.mrb[0].mxu0
    %v978 = vadd.f32 0.0, %v977
    %v979 = vpop.f32.mrb[0].mxu0
    %980 = vmatprep.mubr.bf16.mxu0 0
    %981 = vmatmul.mubr.bf16.gmra.mrb[0].mxu0 %v692
    %v982 = vpop.f32.mrb[0].mxu0
    %v983 = vadd.f32 0.0, %v982
    %v984 = vpop.f32.mrb[0].mxu0
    %v985 = vpop.f32.mrb[0].mxu0
    %v986 = vadd.f32 0.0, %v985
    %v987 = vpop.f32.mrb[0].mxu0
    %988 = vmatprep.mubr.bf16.mxu0 0
    %989 = vmatmul.mubr.bf16.gmra.mrb[0].mxu0 %v693
    %v990 = vpop.f32.mrb[0].mxu0
    %v991 = vadd.f32 0.0, %v990
    %v992 = vpop.f32.mrb[0].mxu0
    %v993 = vpop.f32.mrb[0].mxu0
    %v994 = vadd.f32 0.0, %v993
    %v995 = vpop.f32.mrb[0].mxu0
    %996 = vmatprep.mubr.bf16.mxu0 0
    %997 = vmatmul.mubr.bf16.gmra.mrb[0].mxu0 %v694
    %v998 = vpop.f32.mrb[0].mxu0
    %v999 = vadd.f32 0.0, %v998
    %v1000 = vpop.f32.mrb[0].mxu0
    %v1001 = vpop.f32.mrb[0].mxu0
    %v1002 = vadd.f32 0.0, %v1001
    %v1003 = vpop.f32.mrb[0].mxu0
    %1004 = vmatprep.mubr.bf16.mxu0 0
    %1005 = vmatmul.mubr.bf16.gmra.mrb[0].mxu0 %v695
    %v1006 = vpop.f32.mrb[0].mxu0
    %v1007 = vadd.f32 0.0, %v1006
    %v1008 = vpop.f32.mrb[0].mxu0
    %v1009 = vpop.f32.mrb[0].mxu0
    %v1010 = vadd.f32 0.0, %v1009
    %v1011 = vpop.f32.mrb[0].mxu0
    %1012 = vmatprep.mubr.bf16.mxu0 0
    %1013 = vmatmul.mubr.bf16.gmra.mrb[0].mxu0 %v696
    %v1014 = vpop.f32.mrb[0].mxu0
    %v1015 = vadd.f32 0.0, %v1014
    %v1016 = vpop.f32.mrb[0].mxu0
    %v1017 = vpop.f32.mrb[0].mxu0
    %v1018 = vadd.f32 0.0, %v1017
    %v1019 = vpop.f32.mrb[0].mxu0
    %1020 = vmatprep.mubr.bf16.mxu0 0
    %1021 = vmatmul.mubr.bf16.gmra.mrb[0].mxu0 %v697
    %v1022 = vpop.f32.mrb[0].mxu0
    %v1023 = vadd.f32 0.0, %v1022
    %v1024 = vpop.f32.mrb[0].mxu0
    %v1025 = vpop.f32.mrb[0].mxu0
    %v1026 = vadd.f32 0.0, %v1025
    %v1027 = vpop.f32.mrb[0].mxu0
    %1028 = vmatprep.mubr.bf16.mxu0 0
    %1029 = vmatmul.mubr.bf16.gmra.mrb[0].mxu0 %v698
    %v1030 = vpop.f32.mrb[0].mxu0
    %v1031 = vadd.f32 0.0, %v1030
    %v1032 = vpop.f32.mrb[0].mxu0
    %v1033 = vpop.f32.mrb[0].mxu0
    %v1034 = vadd.f32 0.0, %v1033
    %v1035 = vpop.f32.mrb[0].mxu0
    %1036 = vdwg.mxu0
    %v1037 = vpack.c.bf16 %v868, %v864
    %v1038 = vpack.c.bf16 %v878, %v874
    %v1039 = vpack.c.bf16 %v888, %v884
    %v1040 = vpack.c.bf16 %v898, %v894
    %v1041 = vpack.c.bf16 %v908, %v904
    %v1042 = vpack.c.bf16 %v918, %v914
    %v1043 = vpack.c.bf16 %v928, %v924
    %v1044 = vpack.c.bf16 %v938, %v934
    %v1045 = vpack.c.bf16 %v978, %v975
    %v1046 = vpack.c.bf16 %v986, %v983
    %v1047 = vpack.c.bf16 %v994, %v991
    %v1048 = vpack.c.bf16 %v1002, %v999
    %v1049 = vpack.c.bf16 %v1010, %v1007
    %v1050 = vpack.c.bf16 %v1018, %v1015
    %v1051 = vpack.c.bf16 %v1026, %v1023
    %v1052 = vpack.c.bf16 %v1034, %v1031
    %v1069 = vunpack.c.l.b16 %v642
    %v1070 = vunpack.c.h.b16 %v642
    %v1071 = vunpack.c.l.b16 %v643
    %v1072 = vunpack.c.h.b16 %v643
    %v1073 = vunpack.c.l.b16 %v644
    %v1074 = vunpack.c.h.b16 %v644
    %v1075 = vunpack.c.l.b16 %v645
    %v1076 = vunpack.c.h.b16 %v645
    %v1077 = vunpack.c.l.b16 %v646
    %v1078 = vunpack.c.h.b16 %v646
    %v1079 = vunpack.c.l.b16 %v647
    %v1080 = vunpack.c.h.b16 %v647
    %v1081 = vunpack.c.l.b16 %v648
    %v1082 = vunpack.c.h.b16 %v648
    %v1083 = vunpack.c.l.b16 %v649
    %v1084 = vunpack.c.h.b16 %v649
    %v1085 = vunpack.c.l.b16 %v650
    %v1086 = vunpack.c.h.b16 %v650
    %v1087 = vunpack.c.l.b16 %v651
    %v1088 = vunpack.c.h.b16 %v651
    %v1089 = vunpack.c.l.b16 %v652
    %v1090 = vunpack.c.h.b16 %v652
    %v1091 = vunpack.c.l.b16 %v653
    %v1092 = vunpack.c.h.b16 %v653
    %v1093 = vunpack.c.l.b16 %v654
    %v1094 = vunpack.c.h.b16 %v654
    %v1095 = vunpack.c.l.b16 %v655
    %v1096 = vunpack.c.h.b16 %v655
    %v1097 = vunpack.c.l.b16 %v656
    %v1098 = vunpack.c.h.b16 %v656
    %v1099 = vunpack.c.l.b16 %v657
    %v1100 = vunpack.c.h.b16 %v657
    %v1101 = vpack.c.b16 %v1071, %v1069
    %v1102 = vpack.c.b16 %v1072, %v1070
    %v1103 = vpack.c.b16 %v1075, %v1073
    %v1104 = vpack.c.b16 %v1076, %v1074
    %v1105 = vpack.c.b16 %v1079, %v1077
    %v1106 = vpack.c.b16 %v1080, %v1078
    %v1107 = vpack.c.b16 %v1083, %v1081
    %v1108 = vpack.c.b16 %v1084, %v1082
    %v1109 = vpack.c.b16 %v1087, %v1085
    %v1110 = vpack.c.b16 %v1088, %v1086
    %v1111 = vpack.c.b16 %v1091, %v1089
    %v1112 = vpack.c.b16 %v1092, %v1090
    %v1113 = vpack.c.b16 %v1095, %v1093
    %v1114 = vpack.c.b16 %v1096, %v1094
    %v1115 = vpack.c.b16 %v1099, %v1097
    %v1116 = vpack.c.b16 %v1100, %v1098
    %1133 = vmatprep.subr.bf16.mxu0 0
    %1134 = vmatpush1.bf16.msra.mxu0 %v1037
    %1135 = vmatprep.subr.bf16.mxu0 0
    %1136 = vmatpush1.bf16.msra.mxu0 %v1038
    %1137 = vmatprep.subr.bf16.mxu0 0
    %1138 = vmatpush1.bf16.msra.mxu0 %v1039
    %1139 = vmatprep.subr.bf16.mxu0 0
    %1140 = vmatpush1.bf16.msra.mxu0 %v1040
    %1141 = vmatprep.subr.bf16.mxu0 0
    %1142 = vmatpush1.bf16.msra.mxu0 %v1041
    %1143 = vmatprep.subr.bf16.mxu0 0
    %1144 = vmatpush1.bf16.msra.mxu0 %v1042
    %1145 = vmatprep.subr.bf16.mxu0 0
    %1146 = vmatpush1.bf16.msra.mxu0 %v1043
    %1147 = vmatprep.subr.bf16.mxu0 0
    %1148 = vmatpush1.bf16.msra.mxu0 %v1044
    %1149 = vmatprep.subr.bf16.mxu0 0
    %1150 = vmatpush1.bf16.msra.mxu0 %v1045
    %1151 = vmatprep.subr.bf16.mxu0 0
    %1152 = vmatpush1.bf16.msra.mxu0 %v1046
    %1153 = vmatprep.subr.bf16.mxu0 0
    %1154 = vmatpush1.bf16.msra.mxu0 %v1047
    %1155 = vmatprep.subr.bf16.mxu0 0
    %1156 = vmatpush1.bf16.msra.mxu0 %v1048
    %1157 = vmatprep.subr.bf16.mxu0 0
    %1158 = vmatpush1.bf16.msra.mxu0 %v1049
    %1159 = vmatprep.subr.bf16.mxu0 0
    %1160 = vmatpush1.bf16.msra.mxu0 %v1050
    %1161 = vmatprep.subr.bf16.mxu0 0
    %1162 = vmatpush1.bf16.msra.mxu0 %v1051
    %1163 = vmatprep.subr.bf16.mxu0 0
    %1164 = vmatpush1.bf16.msra.mxu0 %v1052
    %1165 = vmatprep.mubr.bf16.mxu0 %v1102
    %1166 = vmatmul.mubr.bf16.gmra.mrb[0].mxu0 %v1101
    %v1167 = vpop.f32.mrb[0].mxu0
    %v1168 = vadd.f32 0.0, %v1167
    %v1169 = vpop.f32.mrb[0].mxu0
    %v1170 = vpop.f32.mrb[0].mxu0
    %v1171 = vadd.f32 0.0, %v1170
    %v1172 = vpop.f32.mrb[0].mxu0
    %1173 = vmatprep.mubr.bf16.mxu0 %v1104
    %1174 = vmatmul.mubr.bf16.gmra.mrb[0].mxu0 %v1103
    %v1175 = vpop.f32.mrb[0].mxu0
    %v1176 = vadd.f32 0.0, %v1175
    %v1177 = vpop.f32.mrb[0].mxu0
    %v1178 = vpop.f32.mrb[0].mxu0
    %v1179 = vadd.f32 0.0, %v1178
    %v1180 = vpop.f32.mrb[0].mxu0
    %1181 = vmatprep.mubr.bf16.mxu0 %v1106
    %1182 = vmatmul.mubr.bf16.gmra.mrb[0].mxu0 %v1105
    %v1183 = vpop.f32.mrb[0].mxu0
    %v1184 = vadd.f32 0.0, %v1183
    %v1185 = vpop.f32.mrb[0].mxu0
    %v1186 = vpop.f32.mrb[0].mxu0
    %v1187 = vadd.f32 0.0, %v1186
    %v1188 = vpop.f32.mrb[0].mxu0
    %1189 = vmatprep.mubr.bf16.mxu0 %v1108
    %1190 = vmatmul.mubr.bf16.gmra.mrb[0].mxu0 %v1107
    %v1191 = vpop.f32.mrb[0].mxu0
    %v1192 = vadd.f32 0.0, %v1191
    %v1193 = vpop.f32.mrb[0].mxu0
    %v1194 = vpop.f32.mrb[0].mxu0
    %v1195 = vadd.f32 0.0, %v1194
    %v1196 = vpop.f32.mrb[0].mxu0
    %1197 = vmatprep.mubr.bf16.mxu0 %v1110
    %1198 = vmatmul.mubr.bf16.gmra.mrb[0].mxu0 %v1109
    %v1199 = vpop.f32.mrb[0].mxu0
    %v1200 = vadd.f32 0.0, %v1199
    %v1201 = vpop.f32.mrb[0].mxu0
    %v1202 = vpop.f32.mrb[0].mxu0
    %v1203 = vadd.f32 0.0, %v1202
    %v1204 = vpop.f32.mrb[0].mxu0
    %1205 = vmatprep.mubr.bf16.mxu0 %v1112
    %1206 = vmatmul.mubr.bf16.gmra.mrb[0].mxu0 %v1111
    %v1207 = vpop.f32.mrb[0].mxu0
    %v1208 = vadd.f32 0.0, %v1207
    %v1209 = vpop.f32.mrb[0].mxu0
    %v1210 = vpop.f32.mrb[0].mxu0
    %v1211 = vadd.f32 0.0, %v1210
    %v1212 = vpop.f32.mrb[0].mxu0
    %1213 = vmatprep.mubr.bf16.mxu0 %v1114
    %1214 = vmatmul.mubr.bf16.gmra.mrb[0].mxu0 %v1113
    %v1215 = vpop.f32.mrb[0].mxu0
    %v1216 = vadd.f32 0.0, %v1215
    %v1217 = vpop.f32.mrb[0].mxu0
    %v1218 = vpop.f32.mrb[0].mxu0
    %v1219 = vadd.f32 0.0, %v1218
    %v1220 = vpop.f32.mrb[0].mxu0
    %1221 = vmatprep.mubr.bf16.mxu0 %v1116
    %1222 = vmatmul.mubr.bf16.gmra.mrb[0].mxu0 %v1115
    %v1223 = vpop.f32.mrb[0].mxu0
    %v1224 = vadd.f32 0.0, %v1223
    %v1225 = vpop.f32.mrb[0].mxu0
    %v1226 = vpop.f32.mrb[0].mxu0
    %v1227 = vadd.f32 0.0, %v1226
    %v1228 = vpop.f32.mrb[0].mxu0
    %1229 = vdwg.mxu0
    %v1230 = vadd.f32 %v862, %v1168
    %v1231 = vadd.f32 %v866, %v1171
    %v1232 = vadd.f32 %v872, %v1176
    %v1233 = vadd.f32 %v876, %v1179
    %v1234 = vadd.f32 %v882, %v1184
    %v1235 = vadd.f32 %v886, %v1187
    %v1236 = vadd.f32 %v892, %v1192
    %v1237 = vadd.f32 %v896, %v1195
    %v1238 = vadd.f32 %v902, %v1200
    %v1239 = vadd.f32 %v906, %v1203
    %v1240 = vadd.f32 %v912, %v1208
    %v1241 = vadd.f32 %v916, %v1211
    %v1242 = vadd.f32 %v922, %v1216
    %v1243 = vadd.f32 %v926, %v1219
    %v1244 = vadd.f32 %v932, %v1224
    %v1245 = vadd.f32 %v936, %v1227
    %v1247 = vlaneseq
    %v1248 = vshrl.u32 %v1247, 7
    %v1249 = vsub.s32 0, %v1248
    %v1250 = vrot.slane %v690, %v1249
    %v1252 = vadd.f32 %v1230, %v1250
    %v1253 = vadd.f32 %v1231, %v1250
    %v1254 = vadd.f32 %v1232, %v1250
    %v1255 = vadd.f32 %v1233, %v1250
    %v1256 = vadd.f32 %v1234, %v1250
    %v1257 = vadd.f32 %v1235, %v1250
    %v1258 = vadd.f32 %v1236, %v1250
    %v1259 = vadd.f32 %v1237, %v1250
    %v1260 = vadd.f32 %v1238, %v1250
    %v1261 = vadd.f32 %v1239, %v1250
    %v1262 = vadd.f32 %v1240, %v1250
    %v1263 = vadd.f32 %v1241, %v1250
    %v1264 = vadd.f32 %v1242, %v1250
    %v1265 = vadd.f32 %v1243, %v1250
    %v1266 = vadd.f32 %v1244, %v1250
    %v1267 = vadd.f32 %v1245, %v1250
    %v1268 = vpack.c.bf16 %v1253, %v1252
    %v1269 = vpack.c.bf16 %v1255, %v1254
    %v1270 = vpack.c.bf16 %v1257, %v1256
    %v1271 = vpack.c.bf16 %v1259, %v1258
    %v1272 = vpack.c.bf16 %v1261, %v1260
    %v1273 = vpack.c.bf16 %v1263, %v1262
    %v1274 = vpack.c.bf16 %v1265, %v1264
    %v1275 = vpack.c.bf16 %v1267, %v1266
    %1276 = vmatprep.subr.bf16.mxu0 %v780
    %1277 = vmatpush1.bf16.msra.mxu0 %v779
    %1278 = vmatprep.subr.bf16.mxu0 %v783
    %1279 = vmatpush1.bf16.msra.mxu0 %v782
    %1280 = vmatprep.subr.bf16.mxu0 %v786
    %1281 = vmatpush1.bf16.msra.mxu0 %v785
    %1282 = vmatprep.subr.bf16.mxu0 %v789
    %1283 = vmatpush1.bf16.msra.mxu0 %v788
    %1284 = vmatprep.subr.bf16.mxu0 %v792
    %1285 = vmatpush1.bf16.msra.mxu0 %v791
    %1286 = vmatprep.subr.bf16.mxu0 %v795
    %1287 = vmatpush1.bf16.msra.mxu0 %v794
    %1288 = vmatprep.subr.bf16.mxu0 %v798
    %1289 = vmatpush1.bf16.msra.mxu0 %v797
    %1290 = vmatprep.subr.bf16.mxu0 %v801
    %1291 = vmatpush1.bf16.msra.mxu0 %v800
    %1292 = vmatprep.subr.bf16.mxu0 0
    %1293 = vmatpush1.bf16.msra.mxu0 0
    %1294 = vmatprep.subr.bf16.mxu0 0
    %1295 = vmatpush1.bf16.msra.mxu0 0
    %1296 = vmatprep.subr.bf16.mxu0 0
    %1297 = vmatpush1.bf16.msra.mxu0 0
    %1298 = vmatprep.subr.bf16.mxu0 0
    %1299 = vmatpush1.bf16.msra.mxu0 0
    %1300 = vmatprep.subr.bf16.mxu0 0
    %1301 = vmatpush1.bf16.msra.mxu0 0
    %1302 = vmatprep.subr.bf16.mxu0 0
    %1303 = vmatpush1.bf16.msra.mxu0 0
    %1304 = vmatprep.subr.bf16.mxu0 0
    %1305 = vmatpush1.bf16.msra.mxu0 0
    %1306 = vmatprep.subr.bf16.mxu0 0
    %1307 = vmatpush1.bf16.msra.mxu0 0
    %1308 = vmatprep.mubr.bf16.mxu0 0
    %1309 = vmatmul.mubr.bf16.gmra.mrb[0].mxu0 %v1268
    %v1310 = vpop.f32.mrb[0].mxu0
    %v1311 = vadd.f32 0.0, %v1310
    %v1312 = vpop.f32.mrb[0].mxu0
    %v1313 = vadd.f32 0.0, %v1312
    %v1314 = vpop.f32.mrb[0].mxu0
    %v1315 = vadd.f32 0.0, %v1314
    %v1316 = vpop.f32.mrb[0].mxu0
    %v1317 = vadd.f32 0.0, %v1316
    %1318 = vmatprep.mubr.bf16.mxu0 0
    %1319 = vmatmul.mubr.bf16.gmra.mrb[0].mxu0 %v1269
    %v1320 = vpop.f32.mrb[0].mxu0
    %v1321 = vadd.f32 0.0, %v1320
    %v1322 = vpop.f32.mrb[0].mxu0
    %v1323 = vadd.f32 0.0, %v1322
    %v1324 = vpop.f32.mrb[0].mxu0
    %v1325 = vadd.f32 0.0, %v1324
    %v1326 = vpop.f32.mrb[0].mxu0
    %v1327 = vadd.f32 0.0, %v1326
    %1328 = vmatprep.mubr.bf16.mxu0 0
    %1329 = vmatmul.mubr.bf16.gmra.mrb[0].mxu0 %v1270
    %v1330 = vpop.f32.mrb[0].mxu0
    %v1331 = vadd.f32 0.0, %v1330
    %v1332 = vpop.f32.mrb[0].mxu0
    %v1333 = vadd.f32 0.0, %v1332
    %v1334 = vpop.f32.mrb[0].mxu0
    %v1335 = vadd.f32 0.0, %v1334
    %v1336 = vpop.f32.mrb[0].mxu0
    %v1337 = vadd.f32 0.0, %v1336
    %1338 = vmatprep.mubr.bf16.mxu0 0
    %1339 = vmatmul.mubr.bf16.gmra.mrb[0].mxu0 %v1271
    %v1340 = vpop.f32.mrb[0].mxu0
    %v1341 = vadd.f32 0.0, %v1340
    %v1342 = vpop.f32.mrb[0].mxu0
    %v1343 = vadd.f32 0.0, %v1342
    %v1344 = vpop.f32.mrb[0].mxu0
    %v1345 = vadd.f32 0.0, %v1344
    %v1346 = vpop.f32.mrb[0].mxu0
    %v1347 = vadd.f32 0.0, %v1346
    %1348 = vmatprep.mubr.bf16.mxu0 0
    %1349 = vmatmul.mubr.bf16.gmra.mrb[0].mxu0 %v1272
    %v1350 = vpop.f32.mrb[0].mxu0
    %v1351 = vadd.f32 0.0, %v1350
    %v1352 = vpop.f32.mrb[0].mxu0
    %v1353 = vadd.f32 0.0, %v1352
    %v1354 = vpop.f32.mrb[0].mxu0
    %v1355 = vadd.f32 0.0, %v1354
    %v1356 = vpop.f32.mrb[0].mxu0
    %v1357 = vadd.f32 0.0, %v1356
    %1358 = vmatprep.mubr.bf16.mxu0 0
    %1359 = vmatmul.mubr.bf16.gmra.mrb[0].mxu0 %v1273
    %v1360 = vpop.f32.mrb[0].mxu0
    %v1361 = vadd.f32 0.0, %v1360
    %v1362 = vpop.f32.mrb[0].mxu0
    %v1363 = vadd.f32 0.0, %v1362
    %v1364 = vpop.f32.mrb[0].mxu0
    %v1365 = vadd.f32 0.0, %v1364
    %v1366 = vpop.f32.mrb[0].mxu0
    %v1367 = vadd.f32 0.0, %v1366
    %1368 = vmatprep.mubr.bf16.mxu0 0
    %1369 = vmatmul.mubr.bf16.gmra.mrb[0].mxu0 %v1274
    %v1370 = vpop.f32.mrb[0].mxu0
    %v1371 = vadd.f32 0.0, %v1370
    %v1372 = vpop.f32.mrb[0].mxu0
    %v1373 = vadd.f32 0.0, %v1372
    %v1374 = vpop.f32.mrb[0].mxu0
    %v1375 = vadd.f32 0.0, %v1374
    %v1376 = vpop.f32.mrb[0].mxu0
    %v1377 = vadd.f32 0.0, %v1376
    %1378 = vmatprep.mubr.bf16.mxu0 0
    %1379 = vmatmul.mubr.bf16.gmra.mrb[0].mxu0 %v1275
    %v1380 = vpop.f32.mrb[0].mxu0
    %v1381 = vadd.f32 0.0, %v1380
    %v1382 = vpop.f32.mrb[0].mxu0
    %v1383 = vadd.f32 0.0, %v1382
    %v1384 = vpop.f32.mrb[0].mxu0
    %v1385 = vadd.f32 0.0, %v1384
    %v1386 = vpop.f32.mrb[0].mxu0
    %v1387 = vadd.f32 0.0, %v1386
    %1388 = vdwg.mxu0
    %1389 = vmatprep.subr.bf16.mxu0 0
    %1390 = vmatpush1.bf16.msra.mxu0 %v781
    %1391 = vmatprep.subr.bf16.mxu0 0
    %1392 = vmatpush1.bf16.msra.mxu0 %v784
    %1393 = vmatprep.subr.bf16.mxu0 0
    %1394 = vmatpush1.bf16.msra.mxu0 %v787
    %1395 = vmatprep.subr.bf16.mxu0 0
    %1396 = vmatpush1.bf16.msra.mxu0 %v790
    %1397 = vmatprep.subr.bf16.mxu0 0
    %1398 = vmatpush1.bf16.msra.mxu0 %v793
    %1399 = vmatprep.subr.bf16.mxu0 0
    %1400 = vmatpush1.bf16.msra.mxu0 %v796
    %1401 = vmatprep.subr.bf16.mxu0 0
    %1402 = vmatpush1.bf16.msra.mxu0 %v799
    %1403 = vmatprep.subr.bf16.mxu0 0
    %1404 = vmatpush1.bf16.msra.mxu0 %v802
    %1405 = vmatprep.subr.bf16.mxu0 0
    %1406 = vmatpush1.bf16.msra.mxu0 0
    %1407 = vmatprep.subr.bf16.mxu0 0
    %1408 = vmatpush1.bf16.msra.mxu0 0
    %1409 = vmatprep.subr.bf16.mxu0 0
    %1410 = vmatpush1.bf16.msra.mxu0 0
    %1411 = vmatprep.subr.bf16.mxu0 0
    %1412 = vmatpush1.bf16.msra.mxu0 0
    %1413 = vmatprep.subr.bf16.mxu0 0
    %1414 = vmatpush1.bf16.msra.mxu0 0
    %1415 = vmatprep.subr.bf16.mxu0 0
    %1416 = vmatpush1.bf16.msra.mxu0 0
    %1417 = vmatprep.subr.bf16.mxu0 0
    %1418 = vmatpush1.bf16.msra.mxu0 0
    %1419 = vmatprep.subr.bf16.mxu0 0
    %1420 = vmatpush1.bf16.msra.mxu0 0
    %1421 = vmatprep.mubr.bf16.mxu0 0
    %1422 = vmatmul.mubr.bf16.gmra.mrb[0].mxu0 %v1268
    %v1423 = vpop.f32.mrb[0].mxu0
    %v1424 = vadd.f32 0.0, %v1423
    %v1425 = vpop.f32.mrb[0].mxu0
    %v1426 = vpop.f32.mrb[0].mxu0
    %v1427 = vadd.f32 0.0, %v1426
    %v1428 = vpop.f32.mrb[0].mxu0
    %1429 = vmatprep.mubr.bf16.mxu0 0
    %1430 = vmatmul.mubr.bf16.gmra.mrb[0].mxu0 %v1269
    %v1431 = vpop.f32.mrb[0].mxu0
    %v1432 = vadd.f32 0.0, %v1431
    %v1433 = vpop.f32.mrb[0].mxu0
    %v1434 = vpop.f32.mrb[0].mxu0
    %v1435 = vadd.f32 0.0, %v1434
    %v1436 = vpop.f32.mrb[0].mxu0
    %1437 = vmatprep.mubr.bf16.mxu0 0
    %1438 = vmatmul.mubr.bf16.gmra.mrb[0].mxu0 %v1270
    %v1439 = vpop.f32.mrb[0].mxu0
    %v1440 = vadd.f32 0.0, %v1439
    %v1441 = vpop.f32.mrb[0].mxu0
    %v1442 = vpop.f32.mrb[0].mxu0
    %v1443 = vadd.f32 0.0, %v1442
    %v1444 = vpop.f32.mrb[0].mxu0
    %1445 = vmatprep.mubr.bf16.mxu0 0
    %1446 = vmatmul.mubr.bf16.gmra.mrb[0].mxu0 %v1271
    %v1447 = vpop.f32.mrb[0].mxu0
    %v1448 = vadd.f32 0.0, %v1447
    %v1449 = vpop.f32.mrb[0].mxu0
    %v1450 = vpop.f32.mrb[0].mxu0
    %v1451 = vadd.f32 0.0, %v1450
    %v1452 = vpop.f32.mrb[0].mxu0
    %1453 = vmatprep.mubr.bf16.mxu0 0
    %1454 = vmatmul.mubr.bf16.gmra.mrb[0].mxu0 %v1272
    %v1455 = vpop.f32.mrb[0].mxu0
    %v1456 = vadd.f32 0.0, %v1455
    %v1457 = vpop.f32.mrb[0].mxu0
    %v1458 = vpop.f32.mrb[0].mxu0
    %v1459 = vadd.f32 0.0, %v1458
    %v1460 = vpop.f32.mrb[0].mxu0
    %1461 = vmatprep.mubr.bf16.mxu0 0
    %1462 = vmatmul.mubr.bf16.gmra.mrb[0].mxu0 %v1273
    %v1463 = vpop.f32.mrb[0].mxu0
    %v1464 = vadd.f32 0.0, %v1463
    %v1465 = vpop.f32.mrb[0].mxu0
    %v1466 = vpop.f32.mrb[0].mxu0
    %v1467 = vadd.f32 0.0, %v1466
    %v1468 = vpop.f32.mrb[0].mxu0
    %1469 = vmatprep.mubr.bf16.mxu0 0
    %1470 = vmatmul.mubr.bf16.gmra.mrb[0].mxu0 %v1274
    %v1471 = vpop.f32.mrb[0].mxu0
    %v1472 = vadd.f32 0.0, %v1471
    %v1473 = vpop.f32.mrb[0].mxu0
    %v1474 = vpop.f32.mrb[0].mxu0
    %v1475 = vadd.f32 0.0, %v1474
    %v1476 = vpop.f32.mrb[0].mxu0
    %1477 = vmatprep.mubr.bf16.mxu0 0
    %1478 = vmatmul.mubr.bf16.gmra.mrb[0].mxu0 %v1275
    %v1479 = vpop.f32.mrb[0].mxu0
    %v1480 = vadd.f32 0.0, %v1479
    %v1481 = vpop.f32.mrb[0].mxu0
    %v1482 = vpop.f32.mrb[0].mxu0
    %v1483 = vadd.f32 0.0, %v1482
    %v1484 = vpop.f32.mrb[0].mxu0
    %1485 = vdwg.mxu0
    %v1486 = vpack.c.bf16 %v1317, %v1313
    %v1487 = vpack.c.bf16 %v1327, %v1323
    %v1488 = vpack.c.bf16 %v1337, %v1333
    %v1489 = vpack.c.bf16 %v1347, %v1343
    %v1490 = vpack.c.bf16 %v1357, %v1353
    %v1491 = vpack.c.bf16 %v1367, %v1363
    %v1492 = vpack.c.bf16 %v1377, %v1373
    %v1493 = vpack.c.bf16 %v1387, %v1383
    %v1494 = vpack.c.bf16 %v1427, %v1424
    %v1495 = vpack.c.bf16 %v1435, %v1432
    %v1496 = vpack.c.bf16 %v1443, %v1440
    %v1497 = vpack.c.bf16 %v1451, %v1448
    %v1498 = vpack.c.bf16 %v1459, %v1456
    %v1499 = vpack.c.bf16 %v1467, %v1464
    %v1500 = vpack.c.bf16 %v1475, %v1472
    %v1501 = vpack.c.bf16 %v1483, %v1480
    %1502 = vmatprep.subr.bf16.mxu0 0
    %1503 = vmatpush1.bf16.msra.mxu0 %v1486
    %1504 = vmatprep.subr.bf16.mxu0 0
    %1505 = vmatpush1.bf16.msra.mxu0 %v1487
    %1506 = vmatprep.subr.bf16.mxu0 0
    %1507 = vmatpush1.bf16.msra.mxu0 %v1488
    %1508 = vmatprep.subr.bf16.mxu0 0
    %1509 = vmatpush1.bf16.msra.mxu0 %v1489
    %1510 = vmatprep.subr.bf16.mxu0 0
    %1511 = vmatpush1.bf16.msra.mxu0 %v1490
    %1512 = vmatprep.subr.bf16.mxu0 0
    %1513 = vmatpush1.bf16.msra.mxu0 %v1491
    %1514 = vmatprep.subr.bf16.mxu0 0
    %1515 = vmatpush1.bf16.msra.mxu0 %v1492
    %1516 = vmatprep.subr.bf16.mxu0 0
    %1517 = vmatpush1.bf16.msra.mxu0 %v1493
    %1518 = vmatprep.subr.bf16.mxu0 0
    %1519 = vmatpush1.bf16.msra.mxu0 %v1494
    %1520 = vmatprep.subr.bf16.mxu0 0
    %1521 = vmatpush1.bf16.msra.mxu0 %v1495
    %1522 = vmatprep.subr.bf16.mxu0 0
    %1523 = vmatpush1.bf16.msra.mxu0 %v1496
    %1524 = vmatprep.subr.bf16.mxu0 0
    %1525 = vmatpush1.bf16.msra.mxu0 %v1497
    %1526 = vmatprep.subr.bf16.mxu0 0
    %1527 = vmatpush1.bf16.msra.mxu0 %v1498
    %1528 = vmatprep.subr.bf16.mxu0 0
    %1529 = vmatpush1.bf16.msra.mxu0 %v1499
    %1530 = vmatprep.subr.bf16.mxu0 0
    %1531 = vmatpush1.bf16.msra.mxu0 %v1500
    %1532 = vmatprep.subr.bf16.mxu0 0
    %1533 = vmatpush1.bf16.msra.mxu0 %v1501
    %1534 = vmatprep.mubr.bf16.mxu0 %v1102
    %1535 = vmatmul.mubr.bf16.gmra.mrb[0].mxu0 %v1101
    %v1536 = vpop.f32.mrb[0].mxu0
    %v1537 = vadd.f32 0.0, %v1536
    %v1538 = vpop.f32.mrb[0].mxu0
    %v1539 = vpop.f32.mrb[0].mxu0
    %v1540 = vadd.f32 0.0, %v1539
    %v1541 = vpop.f32.mrb[0].mxu0
    %1542 = vmatprep.mubr.bf16.mxu0 %v1104
    %1543 = vmatmul.mubr.bf16.gmra.mrb[0].mxu0 %v1103
    %v1544 = vpop.f32.mrb[0].mxu0
    %v1545 = vadd.f32 0.0, %v1544
    %v1546 = vpop.f32.mrb[0].mxu0
    %v1547 = vpop.f32.mrb[0].mxu0
    %v1548 = vadd.f32 0.0, %v1547
    %v1549 = vpop.f32.mrb[0].mxu0
    %1550 = vmatprep.mubr.bf16.mxu0 %v1106
    %1551 = vmatmul.mubr.bf16.gmra.mrb[0].mxu0 %v1105
    %v1552 = vpop.f32.mrb[0].mxu0
    %v1553 = vadd.f32 0.0, %v1552
    %v1554 = vpop.f32.mrb[0].mxu0
    %v1555 = vpop.f32.mrb[0].mxu0
    %v1556 = vadd.f32 0.0, %v1555
    %v1557 = vpop.f32.mrb[0].mxu0
    %1558 = vmatprep.mubr.bf16.mxu0 %v1108
    %1559 = vmatmul.mubr.bf16.gmra.mrb[0].mxu0 %v1107
    %v1560 = vpop.f32.mrb[0].mxu0
    %v1561 = vadd.f32 0.0, %v1560
    %v1562 = vpop.f32.mrb[0].mxu0
    %v1563 = vpop.f32.mrb[0].mxu0
    %v1564 = vadd.f32 0.0, %v1563
    %v1565 = vpop.f32.mrb[0].mxu0
    %1566 = vmatprep.mubr.bf16.mxu0 %v1110
    %1567 = vmatmul.mubr.bf16.gmra.mrb[0].mxu0 %v1109
    %v1568 = vpop.f32.mrb[0].mxu0
    %v1569 = vadd.f32 0.0, %v1568
    %v1570 = vpop.f32.mrb[0].mxu0
    %v1571 = vpop.f32.mrb[0].mxu0
    %v1572 = vadd.f32 0.0, %v1571
    %v1573 = vpop.f32.mrb[0].mxu0
    %1574 = vmatprep.mubr.bf16.mxu0 %v1112
    %1575 = vmatmul.mubr.bf16.gmra.mrb[0].mxu0 %v1111
    %v1576 = vpop.f32.mrb[0].mxu0
    %v1577 = vadd.f32 0.0, %v1576
    %v1578 = vpop.f32.mrb[0].mxu0
    %v1579 = vpop.f32.mrb[0].mxu0
    %v1580 = vadd.f32 0.0, %v1579
    %v1581 = vpop.f32.mrb[0].mxu0
    %1582 = vmatprep.mubr.bf16.mxu0 %v1114
    %1583 = vmatmul.mubr.bf16.gmra.mrb[0].mxu0 %v1113
    %v1584 = vpop.f32.mrb[0].mxu0
    %v1585 = vadd.f32 0.0, %v1584
    %v1586 = vpop.f32.mrb[0].mxu0
    %v1587 = vpop.f32.mrb[0].mxu0
    %v1588 = vadd.f32 0.0, %v1587
    %v1589 = vpop.f32.mrb[0].mxu0
    %1590 = vmatprep.mubr.bf16.mxu0 %v1116
    %1591 = vmatmul.mubr.bf16.gmra.mrb[0].mxu0 %v1115
    %v1592 = vpop.f32.mrb[0].mxu0
    %v1593 = vadd.f32 0.0, %v1592
    %v1594 = vpop.f32.mrb[0].mxu0
    %v1595 = vpop.f32.mrb[0].mxu0
    %v1596 = vadd.f32 0.0, %v1595
    %v1597 = vpop.f32.mrb[0].mxu0
    %1598 = vdwg.mxu0
    %v1599 = vadd.f32 %v1311, %v1537
    %v1600 = vadd.f32 %v1315, %v1540
    %v1601 = vadd.f32 %v1321, %v1545
    %v1602 = vadd.f32 %v1325, %v1548
    %v1603 = vadd.f32 %v1331, %v1553
    %v1604 = vadd.f32 %v1335, %v1556
    %v1605 = vadd.f32 %v1341, %v1561
    %v1606 = vadd.f32 %v1345, %v1564
    %v1607 = vadd.f32 %v1351, %v1569
    %v1608 = vadd.f32 %v1355, %v1572
    %v1609 = vadd.f32 %v1361, %v1577
    %v1610 = vadd.f32 %v1365, %v1580
    %v1611 = vadd.f32 %v1371, %v1585
    %v1612 = vadd.f32 %v1375, %v1588
    %v1613 = vadd.f32 %v1381, %v1593
    %v1614 = vadd.f32 %v1385, %v1596
    %v1615 = vadd.f32 %v1599, %v1250
    %v1616 = vadd.f32 %v1600, %v1250
    %v1617 = vadd.f32 %v1601, %v1250
    %v1618 = vadd.f32 %v1602, %v1250
    %v1619 = vadd.f32 %v1603, %v1250
    %v1620 = vadd.f32 %v1604, %v1250
    %v1621 = vadd.f32 %v1605, %v1250
    %v1622 = vadd.f32 %v1606, %v1250
    %v1623 = vadd.f32 %v1607, %v1250
    %v1624 = vadd.f32 %v1608, %v1250
    %v1625 = vadd.f32 %v1609, %v1250
    %v1626 = vadd.f32 %v1610, %v1250
    %v1627 = vadd.f32 %v1611, %v1250
    %v1628 = vadd.f32 %v1612, %v1250
    %v1629 = vadd.f32 %v1613, %v1250
    %v1630 = vadd.f32 %v1614, %v1250
    %v1631 = vpack.c.bf16 %v1616, %v1615
    %v1632 = vpack.c.bf16 %v1618, %v1617
    %v1633 = vpack.c.bf16 %v1620, %v1619
    %v1634 = vpack.c.bf16 %v1622, %v1621
    %v1635 = vpack.c.bf16 %v1624, %v1623
    %v1636 = vpack.c.bf16 %v1626, %v1625
    %v1637 = vpack.c.bf16 %v1628, %v1627
    %v1638 = vpack.c.bf16 %v1630, %v1629
    %v1639 = vld [vmem:[#allocation11] sm:$0xf]
    %v1640 = vld [vmem:[#allocation11 + $0x4] sm:$0xf]
    %v1641 = vld [vmem:[#allocation11 + $0x8] sm:$0xf]
    %v1642 = vld [vmem:[#allocation11 + $0xc] sm:$0xf]
    %v1643 = vld [vmem:[#allocation11 + $0x10] sm:$0xf]
    %v1644 = vld [vmem:[#allocation11 + $0x14] sm:$0xf]
    %v1645 = vld [vmem:[#allocation11 + $0x18] sm:$0xf]
    %v1646 = vld [vmem:[#allocation11 + $0x1c] sm:$0xf]
    %v1647 = vld [vmem:[#allocation11 + $0x20] sm:$0xf]
    %v1648 = vld [vmem:[#allocation11 + $0x24] sm:$0xf]
    %v1649 = vld [vmem:[#allocation11 + $0x28] sm:$0xf]
    %v1650 = vld [vmem:[#allocation11 + $0x2c] sm:$0xf]
    %v1651 = vld [vmem:[#allocation11 + $0x30] sm:$0xf]
    %v1652 = vld [vmem:[#allocation11 + $0x34] sm:$0xf]
    %v1653 = vld [vmem:[#allocation11 + $0x38] sm:$0xf]
    %v1654 = vld [vmem:[#allocation11 + $0x3c] sm:$0xf]
    %v1655 = vld [vmem:[%s9] sm:$0x1]
    %v1657 = vlaneseq
    %v1658 = vshrl.u32 %v1657, 7
    %v1659 = vsub.s32 0, %v1658
    %v1660 = vrot.slane %v1655, %v1659
    %v1678 = vunpack.c.l.b16 %v1639
    %v1679 = vunpack.c.l.b16 %v1640
    %v1680 = vunpack.c.l.b16 %v1641
    %v1681 = vunpack.c.l.b16 %v1642
    %v1682 = vunpack.c.l.b16 %v1643
    %v1683 = vunpack.c.l.b16 %v1644
    %v1684 = vunpack.c.l.b16 %v1645
    %v1685 = vunpack.c.l.b16 %v1646
    %v1686 = vunpack.c.l.b16 %v1647
    %v1687 = vunpack.c.l.b16 %v1648
    %v1688 = vunpack.c.l.b16 %v1649
    %v1689 = vunpack.c.l.b16 %v1650
    %v1690 = vunpack.c.l.b16 %v1651
    %v1691 = vunpack.c.l.b16 %v1652
    %v1692 = vunpack.c.l.b16 %v1653
    %v1693 = vunpack.c.l.b16 %v1654
    %v1694 = vpack.c.b16 %v1679, %v1678
    %v1695 = vpack.c.b16 %v1681, %v1680
    %v1696 = vpack.c.b16 %v1683, %v1682
    %v1697 = vpack.c.b16 %v1685, %v1684
    %v1698 = vpack.c.b16 %v1687, %v1686
    %v1699 = vpack.c.b16 %v1689, %v1688
    %v1700 = vpack.c.b16 %v1691, %v1690
    %v1701 = vpack.c.b16 %v1693, %v1692
    %1710 = vmatprep.subr.bf16.mxu0 0
    %1711 = vmatpush1.bf16.msra.mxu0 %v1694
    %1712 = vmatprep.subr.bf16.mxu0 0
    %1713 = vmatpush1.bf16.msra.mxu0 %v1695
    %1714 = vmatprep.subr.bf16.mxu0 0
    %1715 = vmatpush1.bf16.msra.mxu0 %v1696
    %1716 = vmatprep.subr.bf16.mxu0 0
    %1717 = vmatpush1.bf16.msra.mxu0 %v1697
    %1718 = vmatprep.subr.bf16.mxu0 0
    %1719 = vmatpush1.bf16.msra.mxu0 %v1698
    %1720 = vmatprep.subr.bf16.mxu0 0
    %1721 = vmatpush1.bf16.msra.mxu0 %v1699
    %1722 = vmatprep.subr.bf16.mxu0 0
    %1723 = vmatpush1.bf16.msra.mxu0 %v1700
    %1724 = vmatprep.subr.bf16.mxu0 0
    %1725 = vmatpush1.bf16.msra.mxu0 %v1701
    %1726 = vmatprep.subr.bf16.mxu0 0
    %1727 = vmatpush1.bf16.msra.mxu0 0
    %1728 = vmatprep.subr.bf16.mxu0 0
    %1729 = vmatpush1.bf16.msra.mxu0 0
    %1730 = vmatprep.subr.bf16.mxu0 0
    %1731 = vmatpush1.bf16.msra.mxu0 0
    %1732 = vmatprep.subr.bf16.mxu0 0
    %1733 = vmatpush1.bf16.msra.mxu0 0
    %1734 = vmatprep.subr.bf16.mxu0 0
    %1735 = vmatpush1.bf16.msra.mxu0 0
    %1736 = vmatprep.subr.bf16.mxu0 0
    %1737 = vmatpush1.bf16.msra.mxu0 0
    %1738 = vmatprep.subr.bf16.mxu0 0
    %1739 = vmatpush1.bf16.msra.mxu0 0
    %1740 = vmatprep.subr.bf16.mxu0 0
    %1741 = vmatpush1.bf16.msra.mxu0 0
    %1742 = vmatprep.mubr.bf16.mxu0 0
    %1743 = vmatmul.mubr.bf16.gmra.mrb[0].mxu0 %v1631
    %v1744 = vpop.f32.mrb[0].mxu0
    %v1745 = vadd.f32 %v1660, %v1744
    %v1746 = vpop.f32.mrb[0].mxu0
    %v1747 = vpop.f32.mrb[0].mxu0
    %v1748 = vadd.f32 %v1660, %v1747
    %v1749 = vpop.f32.mrb[0].mxu0
    %1750 = vmatprep.mubr.bf16.mxu0 0
    %1751 = vmatmul.mubr.bf16.gmra.mrb[0].mxu0 %v1632
    %v1752 = vpop.f32.mrb[0].mxu0
    %v1753 = vadd.f32 %v1660, %v1752
    %v1754 = vpop.f32.mrb[0].mxu0
    %v1755 = vpop.f32.mrb[0].mxu0
    %v1756 = vadd.f32 %v1660, %v1755
    %v1757 = vpop.f32.mrb[0].mxu0
    %1758 = vmatprep.mubr.bf16.mxu0 0
    %1759 = vmatmul.mubr.bf16.gmra.mrb[0].mxu0 %v1633
    %v1760 = vpop.f32.mrb[0].mxu0
    %v1761 = vadd.f32 %v1660, %v1760
    %v1762 = vpop.f32.mrb[0].mxu0
    %v1763 = vpop.f32.mrb[0].mxu0
    %v1764 = vadd.f32 %v1660, %v1763
    %v1765 = vpop.f32.mrb[0].mxu0
    %1766 = vmatprep.mubr.bf16.mxu0 0
    %1767 = vmatmul.mubr.bf16.gmra.mrb[0].mxu0 %v1634
    %v1768 = vpop.f32.mrb[0].mxu0
    %v1769 = vadd.f32 %v1660, %v1768
    %v1770 = vpop.f32.mrb[0].mxu0
    %v1771 = vpop.f32.mrb[0].mxu0
    %v1772 = vadd.f32 %v1660, %v1771
    %v1773 = vpop.f32.mrb[0].mxu0
    %1774 = vmatprep.mubr.bf16.mxu0 0
    %1775 = vmatmul.mubr.bf16.gmra.mrb[0].mxu0 %v1635
    %v1776 = vpop.f32.mrb[0].mxu0
    %v1777 = vadd.f32 %v1660, %v1776
    %v1778 = vpop.f32.mrb[0].mxu0
    %v1779 = vpop.f32.mrb[0].mxu0
    %v1780 = vadd.f32 %v1660, %v1779
    %v1781 = vpop.f32.mrb[0].mxu0
    %1782 = vmatprep.mubr.bf16.mxu0 0
    %1783 = vmatmul.mubr.bf16.gmra.mrb[0].mxu0 %v1636
    %v1784 = vpop.f32.mrb[0].mxu0
    %v1785 = vadd.f32 %v1660, %v1784
    %v1786 = vpop.f32.mrb[0].mxu0
    %v1787 = vpop.f32.mrb[0].mxu0
    %v1788 = vadd.f32 %v1660, %v1787
    %v1789 = vpop.f32.mrb[0].mxu0
    %1790 = vmatprep.mubr.bf16.mxu0 0
    %1791 = vmatmul.mubr.bf16.gmra.mrb[0].mxu0 %v1637
    %v1792 = vpop.f32.mrb[0].mxu0
    %v1793 = vadd.f32 %v1660, %v1792
    %v1794 = vpop.f32.mrb[0].mxu0
    %v1795 = vpop.f32.mrb[0].mxu0
    %v1796 = vadd.f32 %v1660, %v1795
    %v1797 = vpop.f32.mrb[0].mxu0
    %1798 = vmatprep.mubr.bf16.mxu0 0
    %1799 = vmatmul.mubr.bf16.gmra.mrb[0].mxu0 %v1638
    %v1800 = vpop.f32.mrb[0].mxu0
    %v1801 = vadd.f32 %v1660, %v1800
    %v1802 = vpop.f32.mrb[0].mxu0
    %v1803 = vpop.f32.mrb[0].mxu0
    %v1804 = vadd.f32 %v1660, %v1803
    %v1805 = vpop.f32.mrb[0].mxu0
    %1806 = vdwg.mxu0
    %vm1807 = vcmp.gt.f32.partialorder %v1745, 0.0
    %vm1808 = vcmp.gt.f32.partialorder %v1748, 0.0
    %vm1809 = vcmp.gt.f32.partialorder %v1753, 0.0
    %vm1810 = vcmp.gt.f32.partialorder %v1756, 0.0
    %vm1811 = vcmp.gt.f32.partialorder %v1761, 0.0
    %vm1812 = vcmp.gt.f32.partialorder %v1764, 0.0
    %vm1813 = vcmp.gt.f32.partialorder %v1769, 0.0
    %vm1814 = vcmp.gt.f32.partialorder %v1772, 0.0
    %vm1815 = vcmp.gt.f32.partialorder %v1777, 0.0
    %vm1816 = vcmp.gt.f32.partialorder %v1780, 0.0
    %vm1817 = vcmp.gt.f32.partialorder %v1785, 0.0
    %vm1818 = vcmp.gt.f32.partialorder %v1788, 0.0
    %vm1819 = vcmp.gt.f32.partialorder %v1793, 0.0
    %vm1820 = vcmp.gt.f32.partialorder %v1796, 0.0
    %vm1821 = vcmp.gt.f32.partialorder %v1801, 0.0
    %vm1822 = vcmp.gt.f32.partialorder %v1804, 0.0
    %v1823 = vmul.f32 %v1745, 0.01
    %v1824 = vmul.f32 %v1748, 0.01
    %v1825 = vmul.f32 %v1753, 0.01
    %v1826 = vmul.f32 %v1756, 0.01
    %v1827 = vmul.f32 %v1761, 0.01
    %v1828 = vmul.f32 %v1764, 0.01
    %v1829 = vmul.f32 %v1769, 0.01
    %v1830 = vmul.f32 %v1772, 0.01
    %v1831 = vmul.f32 %v1777, 0.01
    %v1832 = vmul.f32 %v1780, 0.01
    %v1833 = vmul.f32 %v1785, 0.01
    %v1834 = vmul.f32 %v1788, 0.01
    %v1835 = vmul.f32 %v1793, 0.01
    %v1836 = vmul.f32 %v1796, 0.01
    %v1837 = vmul.f32 %v1801, 0.01
    %v1838 = vmul.f32 %v1804, 0.01
    %v1839 = vsel %vm1807, %v1745, %v1823
    %v1840 = vsel %vm1808, %v1748, %v1824
    %v1841 = vsel %vm1809, %v1753, %v1825
    %v1842 = vsel %vm1810, %v1756, %v1826
    %v1843 = vsel %vm1811, %v1761, %v1827
    %v1844 = vsel %vm1812, %v1764, %v1828
    %v1845 = vsel %vm1813, %v1769, %v1829
    %v1846 = vsel %vm1814, %v1772, %v1830
    %v1847 = vsel %vm1815, %v1777, %v1831
    %v1848 = vsel %vm1816, %v1780, %v1832
    %v1849 = vsel %vm1817, %v1785, %v1833
    %v1850 = vsel %vm1818, %v1788, %v1834
    %v1851 = vsel %vm1819, %v1793, %v1835
    %v1852 = vsel %vm1820, %v1796, %v1836
    %v1853 = vsel %vm1821, %v1801, %v1837
    %v1854 = vsel %vm1822, %v1804, %v1838
    %v1855 = vpack.c.bf16 %v1840, %v1839
    %v1856 = vpack.c.bf16 %v1842, %v1841
    %v1857 = vpack.c.bf16 %v1844, %v1843
    %v1858 = vpack.c.bf16 %v1846, %v1845
    %v1859 = vpack.c.bf16 %v1848, %v1847
    %v1860 = vpack.c.bf16 %v1850, %v1849
    %v1861 = vpack.c.bf16 %v1852, %v1851
    %v1862 = vpack.c.bf16 %v1854, %v1853
    %v1863 = vld [vmem:[#allocation13] sm:$0xf]
    %v1864 = vld [vmem:[#allocation13 + $0x4] sm:$0xf]
    %v1865 = vld [vmem:[#allocation13 + $0x8] sm:$0xf]
    %v1866 = vld [vmem:[#allocation13 + $0xc] sm:$0xf]
    %v1867 = vld [vmem:[#allocation13 + $0x10] sm:$0xf]
    %v1868 = vld [vmem:[#allocation13 + $0x14] sm:$0xf]
    %v1869 = vld [vmem:[#allocation13 + $0x18] sm:$0xf]
    %v1870 = vld [vmem:[#allocation13 + $0x1c] sm:$0xf]
    %v1871 = vld [vmem:[#allocation13 + $0x20] sm:$0xf]
    %v1872 = vld [vmem:[#allocation13 + $0x24] sm:$0xf]
    %v1873 = vld [vmem:[#allocation13 + $0x28] sm:$0xf]
    %v1874 = vld [vmem:[#allocation13 + $0x2c] sm:$0xf]
    %v1875 = vld [vmem:[#allocation13 + $0x30] sm:$0xf]
    %v1876 = vld [vmem:[#allocation13 + $0x34] sm:$0xf]
    %v1877 = vld [vmem:[#allocation13 + $0x38] sm:$0xf]
    %v1878 = vld [vmem:[#allocation13 + $0x3c] sm:$0xf]
    %v1879 = vld [vmem:[%s11] sm:$0x1]
    %v1881 = vlaneseq
    %v1882 = vshrl.u32 %v1881, 7
    %v1883 = vsub.s32 0, %v1882
    %v1884 = vrot.slane %v1879, %v1883
    %v1902 = vunpack.c.l.b16 %v1863
    %v1903 = vunpack.c.l.b16 %v1864
    %v1904 = vunpack.c.l.b16 %v1865
    %v1905 = vunpack.c.l.b16 %v1866
    %v1906 = vunpack.c.l.b16 %v1867
    %v1907 = vunpack.c.l.b16 %v1868
    %v1908 = vunpack.c.l.b16 %v1869
    %v1909 = vunpack.c.l.b16 %v1870
    %v1910 = vunpack.c.l.b16 %v1871
    %v1911 = vunpack.c.l.b16 %v1872
    %v1912 = vunpack.c.l.b16 %v1873
    %v1913 = vunpack.c.l.b16 %v1874
    %v1914 = vunpack.c.l.b16 %v1875
    %v1915 = vunpack.c.l.b16 %v1876
    %v1916 = vunpack.c.l.b16 %v1877
    %v1917 = vunpack.c.l.b16 %v1878
    %v1918 = vpack.c.b16 %v1903, %v1902
    %v1919 = vpack.c.b16 %v1905, %v1904
    %v1920 = vpack.c.b16 %v1907, %v1906
    %v1921 = vpack.c.b16 %v1909, %v1908
    %v1922 = vpack.c.b16 %v1911, %v1910
    %v1923 = vpack.c.b16 %v1913, %v1912
    %v1924 = vpack.c.b16 %v1915, %v1914
    %v1925 = vpack.c.b16 %v1917, %v1916
    %1934 = vmatprep.subr.bf16.mxu0 0
    %1935 = vmatpush1.bf16.msra.mxu0 %v1918
    %1936 = vmatprep.subr.bf16.mxu0 0
    %1937 = vmatpush1.bf16.msra.mxu0 %v1919
    %1938 = vmatprep.subr.bf16.mxu0 0
    %1939 = vmatpush1.bf16.msra.mxu0 %v1920
    %1940 = vmatprep.subr.bf16.mxu0 0
    %1941 = vmatpush1.bf16.msra.mxu0 %v1921
    %1942 = vmatprep.subr.bf16.mxu0 0
    %1943 = vmatpush1.bf16.msra.mxu0 %v1922
    %1944 = vmatprep.subr.bf16.mxu0 0
    %1945 = vmatpush1.bf16.msra.mxu0 %v1923
    %1946 = vmatprep.subr.bf16.mxu0 0
    %1947 = vmatpush1.bf16.msra.mxu0 %v1924
    %1948 = vmatprep.subr.bf16.mxu0 0
    %1949 = vmatpush1.bf16.msra.mxu0 %v1925
    %1950 = vmatprep.subr.bf16.mxu0 0
    %1951 = vmatpush1.bf16.msra.mxu0 0
    %1952 = vmatprep.subr.bf16.mxu0 0
    %1953 = vmatpush1.bf16.msra.mxu0 0
    %1954 = vmatprep.subr.bf16.mxu0 0
    %1955 = vmatpush1.bf16.msra.mxu0 0
    %1956 = vmatprep.subr.bf16.mxu0 0
    %1957 = vmatpush1.bf16.msra.mxu0 0
    %1958 = vmatprep.subr.bf16.mxu0 0
    %1959 = vmatpush1.bf16.msra.mxu0 0
    %1960 = vmatprep.subr.bf16.mxu0 0
    %1961 = vmatpush1.bf16.msra.mxu0 0
    %1962 = vmatprep.subr.bf16.mxu0 0
    %1963 = vmatpush1.bf16.msra.mxu0 0
    %1964 = vmatprep.subr.bf16.mxu0 0
    %1965 = vmatpush1.bf16.msra.mxu0 0
    %1966 = vmatprep.mubr.bf16.mxu0 0
    %1967 = vmatmul.mubr.bf16.gmra.mrb[0].mxu0 %v1855
    %v1968 = vpop.f32.mrb[0].mxu0
    %v1969 = vadd.f32 %v1884, %v1968
    %v1970 = vpop.f32.mrb[0].mxu0
    %v1971 = vpop.f32.mrb[0].mxu0
    %v1972 = vadd.f32 %v1884, %v1971
    %v1973 = vpop.f32.mrb[0].mxu0
    %1974 = vmatprep.mubr.bf16.mxu0 0
    %1975 = vmatmul.mubr.bf16.gmra.mrb[0].mxu0 %v1856
    %v1976 = vpop.f32.mrb[0].mxu0
    %v1977 = vadd.f32 %v1884, %v1976
    %v1978 = vpop.f32.mrb[0].mxu0
    %v1979 = vpop.f32.mrb[0].mxu0
    %v1980 = vadd.f32 %v1884, %v1979
    %v1981 = vpop.f32.mrb[0].mxu0
    %1982 = vmatprep.mubr.bf16.mxu0 0
    %1983 = vmatmul.mubr.bf16.gmra.mrb[0].mxu0 %v1857
    %v1984 = vpop.f32.mrb[0].mxu0
    %v1985 = vadd.f32 %v1884, %v1984
    %v1986 = vpop.f32.mrb[0].mxu0
    %v1987 = vpop.f32.mrb[0].mxu0
    %v1988 = vadd.f32 %v1884, %v1987
    %v1989 = vpop.f32.mrb[0].mxu0
    %1990 = vmatprep.mubr.bf16.mxu0 0
    %1991 = vmatmul.mubr.bf16.gmra.mrb[0].mxu0 %v1858
    %v1992 = vpop.f32.mrb[0].mxu0
    %v1993 = vadd.f32 %v1884, %v1992
    %v1994 = vpop.f32.mrb[0].mxu0
    %v1995 = vpop.f32.mrb[0].mxu0
    %v1996 = vadd.f32 %v1884, %v1995
    %v1997 = vpop.f32.mrb[0].mxu0
    %1998 = vmatprep.mubr.bf16.mxu0 0
    %1999 = vmatmul.mubr.bf16.gmra.mrb[0].mxu0 %v1859
    %v2000 = vpop.f32.mrb[0].mxu0
    %v2001 = vadd.f32 %v1884, %v2000
    %v2002 = vpop.f32.mrb[0].mxu0
    %v2003 = vpop.f32.mrb[0].mxu0
    %v2004 = vadd.f32 %v1884, %v2003
    %v2005 = vpop.f32.mrb[0].mxu0
    %2006 = vmatprep.mubr.bf16.mxu0 0
    %2007 = vmatmul.mubr.bf16.gmra.mrb[0].mxu0 %v1860
    %v2008 = vpop.f32.mrb[0].mxu0
    %v2009 = vadd.f32 %v1884, %v2008
    %v2010 = vpop.f32.mrb[0].mxu0
    %v2011 = vpop.f32.mrb[0].mxu0
    %v2012 = vadd.f32 %v1884, %v2011
    %v2013 = vpop.f32.mrb[0].mxu0
    %2014 = vmatprep.mubr.bf16.mxu0 0
    %2015 = vmatmul.mubr.bf16.gmra.mrb[0].mxu0 %v1861
    %v2016 = vpop.f32.mrb[0].mxu0
    %v2017 = vadd.f32 %v1884, %v2016
    %v2018 = vpop.f32.mrb[0].mxu0
    %v2019 = vpop.f32.mrb[0].mxu0
    %v2020 = vadd.f32 %v1884, %v2019
    %v2021 = vpop.f32.mrb[0].mxu0
    %2022 = vmatprep.mubr.bf16.mxu0 0
    %2023 = vmatmul.mubr.bf16.gmra.mrb[0].mxu0 %v1862
    %v2024 = vpop.f32.mrb[0].mxu0
    %v2025 = vadd.f32 %v1884, %v2024
    %v2026 = vpop.f32.mrb[0].mxu0
    %v2027 = vpop.f32.mrb[0].mxu0
    %v2028 = vadd.f32 %v1884, %v2027
    %v2029 = vpop.f32.mrb[0].mxu0
    %2030 = vdwg.mxu0
    %2031 = vst [vmem:[#allocation14] sm:$0xff] %v1969
    %2032 = vst [vmem:[#allocation14 + $0x8] sm:$0xff] %v1972
    %2033 = vst [vmem:[#allocation14 + $0x10] sm:$0xff] %v1977
    %2034 = vst [vmem:[#allocation14 + $0x18] sm:$0xff] %v1980
    %2035 = vst [vmem:[#allocation14 + $0x20] sm:$0xff] %v1985
    %2036 = vst [vmem:[#allocation14 + $0x28] sm:$0xff] %v1988
    %2037 = vst [vmem:[#allocation14 + $0x30] sm:$0xff] %v1993
    %2038 = vst [vmem:[#allocation14 + $0x38] sm:$0xff] %v1996
    %2039 = vst [vmem:[#allocation14 + $0x40] sm:$0xff] %v2001
    %2040 = vst [vmem:[#allocation14 + $0x48] sm:$0xff] %v2004
    %2041 = vst [vmem:[#allocation14 + $0x50] sm:$0xff] %v2009
    %2042 = vst [vmem:[#allocation14 + $0x58] sm:$0xff] %v2012
    %2043 = vst [vmem:[#allocation14 + $0x60] sm:$0xff] %v2017
    %2044 = vst [vmem:[#allocation14 + $0x68] sm:$0xff] %v2020
    %2045 = vst [vmem:[#allocation14 + $0x70] sm:$0xff] %v2025
    %2046 = vst [vmem:[#allocation14 + $0x78] sm:$0xff] %v2028
    // Predicated region
    $region78: #{tpu_custom_call.1} parent=1 // pred_check
      _
    $region79: #{tpu_custom_call.1} parent=1 // pred_check_branch
      %2048 = sbr.rel (0) target = $region81
    $region80: #{tpu_custom_call.1} parent=1 // pred_region
      %s2050 = ssub.s32 2048, 2048
      %2051 = vsyncadd [#allocation4], %s2050
      %s2052 = sshll.u32 [#allocation14], 4
      %s2053 = int_to_ptr.vmem [resolvable:$true] %s2052
      %2058 = dma.vmem_to_hbm [thread:$0]  %s2053, 2048, %s12, [#allocation4], 128, 128, 8
    $region81: #{tpu_custom_call.1} parent=1 // pred_fallthru
      _
    // Predicated region
    $region82: #{tpu_custom_call.1} parent=1 // pred_check
      _
    $region83: #{tpu_custom_call.1} parent=1 // pred_check_branch
      %2060 = sbr.rel (0) target = $region85
    $region84: #{tpu_custom_call.1} parent=1 // pred_region
      %2061 = dma.done [#allocation4], 2048
    $region85: #{tpu_custom_call.1} parent=1 // pred_fallthru
      _
    %2062 = vsyncpa [#allocation3], 1
    %2063 = vsyncpa [#allocation6], 1
    %2064 = vsyncpa [#allocation9], 1
    %2065 = vsyncpa [#allocation12], 1
    %2066 = vsyncpa [#allocation4], 1

</llo_original>
